<compile_context>
chip_gen: v7x
topology: tpu7x:2x2x1
jax: 0.10.0
libtpu: 0.0.40
codegen_flags: <defaults>
</compile_context>

<pallas_src>
import functools
import math
from typing import NamedTuple

import jax
import jax.numpy as jnp
from jax.experimental import pallas as pl
from jax.experimental.pallas import tpu as pltpu

_LANE = 128
# Conservative per-TensorCore budget for the fully-resident path (f32 L): fits
# v7x's 64 MiB/TC with headroom for Mosaic internal scratch; trivially fits the
# 128 MiB of v5e/v6e.
_RESIDENT_BUDGET_BYTES = 40 * 1024 * 1024
_VMEM_CEILING_BYTES = 56 * 1024 * 1024


def _round_up(x, m):
    return ((x + m - 1) // m) * m


class _Plan(NamedTuple):
    B: int
    V: int
    Fin: int
    Fout: int
    K: int
    v_pad: int
    n_pad: int
    m_pad: int
    resident: bool
    ti: int
    tr: int
    vmem_limit: int


def _make_plan(B, V, Fin, Fout, K):
    n = B * Fin
    m = B * Fout
    n_pad = _round_up(max(n, _LANE), _LANE)   # lane-dense; do NOT widen past 128
    m_pad = _round_up(max(m, _LANE), _LANE)   # (step is HBM-bound, not MXU-bound)

    # ---- resident path feasibility: everything lives in VMEM for the whole K loop.
    v_pad_res = _round_up(V, _LANE)
    resident_bytes = 4 * (
        v_pad_res * v_pad_res                # L (f32, read from HBM once)
        + v_pad_res * n_pad                  # x0
        + K * n_pad * m_pad                  # per-k block-diagonal weights
        + m_pad                              # bias row
        + v_pad_res * m_pad                  # output accumulator
        + v_pad_res * (3 * n_pad + m_pad)    # y_prev / y_cur / y_new + dot temporaries
    )
    if resident_bytes <= _RESIDENT_BUDGET_BYTES:
        vmem_limit = int(min(_VMEM_CEILING_BYTES,
                             max(16 * 1024 * 1024, 2 * resident_bytes)))
        return _Plan(B, V, Fin, Fout, K, v_pad_res, n_pad, m_pad, True, 0, 0, vmem_limit)

    # ---- tiled fallback (large V): decoupled row tile Ti / contraction tile Tr.
    # (Prefer an even, >=4 row-block count so v7x megacore gets a balanced split.)
    tr = 256 if V >= 256 else 128
    ti = 512 if V >= 512 else tr
    v_pad = _round_up(V, max(ti, tr))
    tiled_bytes = (
        4 * v_pad * n_pad                    # VMEM-resident Y_{k-1} (f32)
        + 2 * n_pad * m_pad                  # W_big[k] (bf16)
        + 2 * 2 * ti * tr                    # double-buffered L tiles (bf16)
        + 2 * 4 * ti * n_pad                 # double-buffered Y_{k-2} row blocks
        + 2 * 4 * ti * m_pad                 # double-buffered running-O row blocks
        + 2 * 4 * ti * (n_pad + m_pad)       # double-buffered outputs
        + 4 * ti * n_pad                     # f32 accumulator scratch
    )
    vmem_limit = int(min(_VMEM_CEILING_BYTES,
                         max(32 * 1024 * 1024, 2 * tiled_bytes)))
    return _Plan(B, V, Fin, Fout, K, v_pad, n_pad, m_pad, False, ti, tr, vmem_limit)


# ---------------------------------------------------------------------------
# Resident path: the whole forward (K recursion + weight contraction + bias)
# in ONE kernel; L / basis / output never leave VMEM.  All f32 for accuracy.
# ---------------------------------------------------------------------------
def _resident_fused_kernel(l_ref, x0_ref, w_ref, b_ref, o_ref, *, K):
    f32 = jnp.float32
    # k = 0 term + bias, accumulated directly into the resident output.
    o_ref[...] = b_ref[...] + jnp.dot(x0_ref[...], w_ref[0],
                                      preferred_element_type=f32)
    if K > 1:
        y_prev = x0_ref[...]
        y_cur = jnp.dot(l_ref[...], y_prev, preferred_element_type=f32)   # T_1
        o_ref[...] += jnp.dot(y_cur, w_ref[1], preferred_element_type=f32)
        for k in range(2, K):                    # K is small and static: unrolled
            y_new = 2.0 * jnp.dot(l_ref[...], y_cur,
                                  preferred_element_type=f32) - y_prev
            o_ref[...] += jnp.dot(y_new, w_ref[k], preferred_element_type=f32)
            y_prev, y_cur = y_cur, y_new


def _forward_resident(plan, l_pad, w_big, bias_big, x0):
    kernel = functools.partial(_resident_fused_kernel, K=plan.K)
    return pl.pallas_call(
        kernel,
        out_shape=jax.ShapeDtypeStruct((plan.v_pad, plan.m_pad), jnp.float32),
        grid=(1,),
        in_specs=[
            pl.BlockSpec((plan.v_pad, plan.v_pad), lambda i: (0, 0)),         # L (f32)
            pl.BlockSpec((plan.v_pad, plan.n_pad), lambda i: (0, 0)),         # x0
            pl.BlockSpec((plan.K, plan.n_pad, plan.m_pad), lambda i: (0, 0, 0)),  # W_big
            pl.BlockSpec((1, plan.m_pad), lambda i: (0, 0)),                  # bias
        ],
        out_specs=pl.BlockSpec((plan.v_pad, plan.m_pad), lambda i: (0, 0)),
        compiler_params=pltpu.CompilerParams(
            dimension_semantics=("arbitrary",),
            vmem_limit_bytes=plan.vmem_limit,
        ),
    )(l_pad, x0, w_big, bias_big)


# ---------------------------------------------------------------------------
# Degenerate K == 1 layer (no Laplacian use): O = X0 @ W_big[0] + bias.
# ---------------------------------------------------------------------------
def _k1_only_kernel(x0_ref, w_ref, b_ref, o_ref):
    o_ref[...] = b_ref[...] + jnp.dot(x0_ref[...], w_ref[...],
                                      preferred_element_type=jnp.float32)


# ---------------------------------------------------------------------------
# Tiled fallback (large V).  Accumulator pattern over the V-contraction axis
# (kept last, "arbitrary"); k=0 term fused into the first step; Y_{k-1} is a
# full VMEM-resident block sliced in-kernel with pl.ds.
# ---------------------------------------------------------------------------
def _tiled_first_step_kernel(l_ref, x0_ref, w0_ref, w1_ref, b_ref,
                             ynew_ref, o_ref, acc_ref, *, ti, tr):
    i = pl.program_id(0)
    r = pl.program_id(1)

    @pl.when(r == 0)
    def _():
        acc_ref[...] = jnp.zeros_like(acc_ref)

    off_r = pl.multiple_of(r * tr, tr)
    acc_ref[...] += jnp.dot(
        l_ref[...],                                               # bf16 L tile
        x0_ref[pl.ds(off_r, tr), :].astype(jnp.bfloat16),         # resident x0 slice
        preferred_element_type=jnp.float32,
    )

    @pl.when(r == pl.num_programs(1) - 1)
    def _():
        y1 = acc_ref[...]                                         # T_1 rows (f32)
        ynew_ref[...] = y1
        off_i = pl.multiple_of(i * ti, ti)
        x0_rows = x0_ref[pl.ds(off_i, ti), :]
        o_ref[...] = (
            b_ref[...]
            + jnp.dot(x0_rows.astype(jnp.bfloat16), w0_ref[...],
                      preferred_element_type=jnp.float32)          # k = 0 term fused
            + jnp.dot(y1.astype(jnp.bfloat16), w1_ref[...],
                      preferred_element_type=jnp.float32)          # k = 1 term
        )


def _tiled_step_kernel(l_ref, ycur_ref, yprev_ref, w_ref, oin_ref,
                       ynew_ref, o_ref, acc_ref, *, ti, tr):
    r = pl.program_id(1)

    @pl.when(r == 0)
    def _():
        acc_ref[...] = jnp.zeros_like(acc_ref)

    off_r = pl.multiple_of(r * tr, tr)
    acc_ref[...] += jnp.dot(
        l_ref[...],
        ycur_ref[pl.ds(off_r, tr), :].astype(jnp.bfloat16),
        preferred_element_type=jnp.float32,
    )

    @pl.when(r == pl.num_programs(1) - 1)
    def _():
        y_new = 2.0 * acc_ref[...] - yprev_ref[...]               # f32 combine
        ynew_ref[...] = y_new
        o_ref[...] = oin_ref[...] + jnp.dot(
            y_new.astype(jnp.bfloat16), w_ref[...],
            preferred_element_type=jnp.float32)


def _forward_tiled(plan, l_pad_bf16, w_big, bias_big, x0):
    ti, tr = plan.ti, plan.tr
    n_i = plan.v_pad // ti
    n_r = plan.v_pad // tr
    w_bf16 = w_big.astype(jnp.bfloat16)
    step_params = pltpu.CompilerParams(
        # Row axis may split across the 2 TCs on v7x (no-op on v5e/v6e);
        # the V-contraction axis must stay last / "arbitrary" for the accumulator.
        dimension_semantics=("parallel", "arbitrary"),
        vmem_limit_bytes=plan.vmem_limit,
    )

    # k = 0 and k = 1 fused into one step.
    y_cur, o_run = pl.pallas_call(
        functools.partial(_tiled_first_step_kernel, ti=ti, tr=tr),
        out_shape=(
            jax.ShapeDtypeStruct((plan.v_pad, plan.n_pad), jnp.float32),
            jax.ShapeDtypeStruct((plan.v_pad, plan.m_pad), jnp.float32),
        ),
        grid=(n_i, n_r),
        in_specs=[
            pl.BlockSpec((ti, tr), lambda i, r: (i, r)),                      # L tile
            pl.BlockSpec((plan.v_pad, plan.n_pad), lambda i, r: (0, 0)),      # x0 resident
            pl.BlockSpec((plan.n_pad, plan.m_pad), lambda i, r: (0, 0)),      # W_big[0]
            pl.BlockSpec((plan.n_pad, plan.m_pad), lambda i, r: (0, 0)),      # W_big[1]
            pl.BlockSpec((1, plan.m_pad), lambda i, r: (0, 0)),               # bias
        ],
        out_specs=(
            pl.BlockSpec((ti, plan.n_pad), lambda i, r: (i, 0)),
            pl.BlockSpec((ti, plan.m_pad), lambda i, r: (i, 0)),
        ),
        scratch_shapes=[pltpu.VMEM((ti, plan.n_pad), jnp.float32)],
        compiler_params=step_params,
    )(l_pad_bf16, x0, w_bf16[0], w_bf16[1], bias_big)

    y_prev = x0
    for k in range(2, plan.K):
        y_new, o_run = pl.pallas_call(
            functools.partial(_tiled_step_kernel, ti=ti, tr=tr),
            out_shape=(
                jax.ShapeDtypeStruct((plan.v_pad, plan.n_pad), jnp.float32),
                jax.ShapeDtypeStruct((plan.v_pad, plan.m_pad), jnp.float32),
            ),
            grid=(n_i, n_r),
            in_specs=[
                pl.BlockSpec((ti, tr), lambda i, r: (i, r)),                  # L tile
                pl.BlockSpec((plan.v_pad, plan.n_pad), lambda i, r: (0, 0)),  # Y_{k-1} resident
                pl.BlockSpec((ti, plan.n_pad), lambda i, r: (i, 0)),          # Y_{k-2} rows
                pl.BlockSpec((plan.n_pad, plan.m_pad), lambda i, r: (0, 0)),  # W_big[k]
                pl.BlockSpec((ti, plan.m_pad), lambda i, r: (i, 0)),          # running O
            ],
            out_specs=(
                pl.BlockSpec((ti, plan.n_pad), lambda i, r: (i, 0)),
                pl.BlockSpec((ti, plan.m_pad), lambda i, r: (i, 0)),
            ),
            scratch_shapes=[pltpu.VMEM((ti, plan.n_pad), jnp.float32)],
            input_output_aliases={4: 1},              # accumulate O in place
            compiler_params=step_params,
        )(l_pad_bf16, y_cur, y_prev, w_bf16[k], o_run)
        y_prev, y_cur = y_cur, y_new

    return o_run


# ---------------------------------------------------------------------------
# One-time prep (hoisted out of the per-forward hot path) + jitted forward.
# ---------------------------------------------------------------------------
def make_chebconv_forward(laplacian, weight, bias, batch_size):
    V = laplacian.shape[0]
    K, Fin, Fout = weight.shape
    B = int(batch_size)
    plan = _make_plan(B, V, Fin, Fout, K)
    f32 = jnp.float32

    # Exact PyTorch contraction: stored (K, Fin, Fout) buffer reinterpreted
    # as (Fin, K, Fout) pairs with the (fin, k)-flattened basis.
    w_eff = jnp.asarray(weight, f32).reshape(Fin, K, Fout)
    # Block-diagonal per-batch expansion so the per-batch fin->fout contraction is
    # one lane-dense matmul.  TODO(synk): per-batch contraction for large B.
    eye_b = jnp.eye(B, dtype=f32)
    w_big = jnp.einsum("bc,fko->kbfco", eye_b, w_eff).reshape(K, B * Fin, B * Fout)
    w_big = jnp.pad(w_big, ((0, 0), (0, plan.n_pad - B * Fin),
                            (0, plan.m_pad - B * Fout)))

    bias_big = jnp.pad(jnp.tile(jnp.asarray(bias, f32), (B,)),
                       (0, plan.m_pad - B * Fout)).reshape(1, plan.m_pad)

    l_pad = jnp.pad(jnp.asarray(laplacian, f32),
                    ((0, plan.v_pad - V), (0, plan.v_pad - V)))
    if not plan.resident:
        # The tiled path streams L (K-1) times: halve that dominant stream with
        # bf16 (f32 accumulation; resident path stays f32 for accuracy).
        l_pad = l_pad.astype(jnp.bfloat16)

    l_pad, w_big, bias_big = jax.device_put((l_pad, w_big, bias_big))

    @jax.jit
    def forward(inputs):
        assert inputs.shape == (B, V, Fin)
        # x0[v, b*Fin+fin] = inputs[b, v, fin]; only cheap lane/row padding here.
        x0 = jnp.transpose(inputs.astype(f32), (1, 0, 2)).reshape(V, B * Fin)
        x0 = jnp.pad(x0, ((0, plan.v_pad - V), (0, plan.n_pad - B * Fin)))

        if plan.K == 1:
            t = 128
            o = pl.pallas_call(
                _k1_only_kernel,
                out_shape=jax.ShapeDtypeStruct((plan.v_pad, plan.m_pad), f32),
                grid=(plan.v_pad // t,),
                in_specs=[
                    pl.BlockSpec((t, plan.n_pad), lambda i: (i, 0)),
                    pl.BlockSpec((plan.n_pad, plan.m_pad), lambda i: (0, 0)),
                    pl.BlockSpec((1, plan.m_pad), lambda i: (0, 0)),
                ],
                out_specs=pl.BlockSpec((t, plan.m_pad), lambda i: (i, 0)),
                compiler_params=pltpu.CompilerParams(
                    dimension_semantics=("parallel",),
                    vmem_limit_bytes=plan.vmem_limit),
            )(x0, w_big[0].astype(f32), bias_big)
        elif plan.resident:
            o = _forward_resident(plan, l_pad, w_big, bias_big, x0)
        else:
            o = _forward_tiled(plan, l_pad, w_big, bias_big, x0)

        out = o[:V, :B * Fout].reshape(V, B, Fout)
        return jnp.transpose(out, (1, 0, 2))

    return forward


# ---------------------------------------------------------------------------
# Pure-JAX reference (mirrors PyTorch cheb_conv_prealloc + bias exactly).
# ---------------------------------------------------------------------------
def cheb_conv_ref(laplacian, inputs, weight, bias):
    B, V, Fin = inputs.shape
    K, _, Fout = weight.shape
    mm = functools.partial(jnp.matmul, precision=jax.lax.Precision.HIGHEST)
    x0 = jnp.transpose(inputs, (1, 2, 0)).reshape(V, Fin * B)
    basis = [x0]
    if K > 1:
        basis.append(mm(laplacian, x0))
        for _ in range(2, K):
            basis.append(2.0 * mm(laplacian, basis[-1]) - basis[-2])
    cb = jnp.stack(basis, axis=0)
    x = cb.reshape(K, V, Fin, B).transpose(3, 1, 2, 0).reshape(B * V, Fin * K)
    w = weight.reshape(Fin * K, Fout)
    return mm(x, w).reshape(B, V, Fout) + bias


# ---------------------------------------------------------------------------
# Parameter init (xavier-normal, ChebConv.__init__ default 'xnorm').
# ---------------------------------------------------------------------------
def init_chebconv_params(key, in_channels, out_channels, kernel_size):
    std = math.sqrt(2.0 / (in_channels + out_channels))
    weight = std * jax.random.normal(
        key, (kernel_size, in_channels, out_channels), dtype=jnp.float32)
    bias = jnp.full((out_channels,), 0.01, dtype=jnp.float32)
    return weight, bias


if __name__ == "__main__":
    B, V, Fin, Fout, K = 2, 192, 4, 6, 3   # V=192: HEALPix nside=4 sphere

    key = jax.random.PRNGKey(0)
    k_w, k_x, k_l = jax.random.split(key, 3)

    weight, bias = init_chebconv_params(k_w, Fin, Fout, K)
    inputs = jax.random.normal(k_x, (B, V, Fin), dtype=jnp.float32)

    # Synthetic symmetric normalized-Laplacian-like matrix (dense stand-in).
    A = jax.random.uniform(k_l, (V, V), dtype=jnp.float32)
    A = 0.5 * (A + A.T)
    deg = jnp.sum(A, axis=1)
    laplacian = jnp.diag(deg) - A
    laplacian = laplacian / jnp.max(jnp.abs(laplacian))   # keep recursion stable

    forward = make_chebconv_forward(laplacian, weight, bias, batch_size=B)  # one-time prep
    out = jax.block_until_ready(forward(inputs))
    ref = cheb_conv_ref(laplacian, inputs, weight, bias)

    assert out.shape == (B, V, Fout)
    # Resident path is all-f32; tolerance kept modest for MXU precision differences.
    rel = float(jnp.max(jnp.abs(out - ref)) / (jnp.max(jnp.abs(ref)) + 1e-6))
    assert rel < 2e-2, f"mismatch vs reference: rel_err={rel:.3e}"
    print("KERNEL_OK")
</pallas_src>

<mosaic_0001>
module attributes {stable_mosaic.version = 11 : i64} {
  func.func @_resident_fused_kernel(%arg0: i32, %arg1: memref<256x256xf32, #tpu.memory_space<vmem>>, %arg2: memref<256x128xf32, #tpu.memory_space<vmem>>, %arg3: memref<3x128x128xf32, #tpu.memory_space<vmem>>, %arg4: memref<1x128xf32, #tpu.memory_space<vmem>>, %arg5: memref<256x128xf32, #tpu.memory_space<vmem>>) attributes {dimension_semantics = [#tpu.dimension_semantics<arbitrary>], iteration_bounds = array<i64: 1>, scalar_prefetch = 0 : i64, scratch_operands = 0 : i64, tpu.core_type = #tpu.core_type<tc>, window_params = [{pipeline_mode = #tpu.pipeline_mode<synchronous>, transform_indices = @transform_0, window_bounds = array<i64: 256, 256>}, {pipeline_mode = #tpu.pipeline_mode<synchronous>, transform_indices = @transform_1, window_bounds = array<i64: 256, 128>}, {pipeline_mode = #tpu.pipeline_mode<synchronous>, transform_indices = @transform_2, window_bounds = array<i64: 3, 128, 128>}, {pipeline_mode = #tpu.pipeline_mode<synchronous>, transform_indices = @transform_3, window_bounds = array<i64: 1, 128>}, {pipeline_mode = #tpu.pipeline_mode<synchronous>, transform_indices = @transform_4, window_bounds = array<i64: 256, 128>}]} {
    %c0 = arith.constant 0 : index
    %c0_0 = arith.constant 0 : index
    %0 = vector.load %arg4[%c0, %c0_0] : memref<1x128xf32, #tpu.memory_space<vmem>>, vector<1x128xf32>
    %c0_1 = arith.constant 0 : index
    %c0_2 = arith.constant 0 : index
    %1 = vector.load %arg2[%c0_1, %c0_2] : memref<256x128xf32, #tpu.memory_space<vmem>>, vector<256x128xf32>
    %c0_3 = arith.constant 0 : index
    %c0_4 = arith.constant 0 : index
    %c0_5 = arith.constant 0 : index
    %2 = vector.load %arg3[%c0_3, %c0_4, %c0_5] : memref<3x128x128xf32, #tpu.memory_space<vmem>>, vector<1x128x128xf32>
    %3 = vector.shape_cast %2 : vector<1x128x128xf32> to vector<128x128xf32>
    %cst = arith.constant dense<0.000000e+00> : vector<256x128xf32>
    %4 = tpu.matmul %1, %3, %cst {dimension_numbers = #tpu.dot_dimension_numbers<[1], [0], [0], [1], [0, 0, 1, 1], [], []>} : vector<256x128xf32>, vector<128x128xf32>, vector<256x128xf32> -> vector<256x128xf32>
    %5 = vector.broadcast %0 : vector<1x128xf32> to vector<256x128xf32>
    %6 = arith.addf %5, %4 : vector<256x128xf32>
    %c0_6 = arith.constant 0 : index
    %c0_7 = arith.constant 0 : index
    %7 = vector.load %arg5[%c0_6, %c0_7] : memref<256x128xf32, #tpu.memory_space<vmem>>, vector<256x128xf32>
    tpu.vector_store %arg5[%c0_6, %c0_7], %6 {strides = array<i32>} : memref<256x128xf32, #tpu.memory_space<vmem>>, vector<256x128xf32>,
    %c0_8 = arith.constant 0 : index
    %c0_9 = arith.constant 0 : index
    %8 = vector.load %arg2[%c0_8, %c0_9] : memref<256x128xf32, #tpu.memory_space<vmem>>, vector<256x128xf32>
    %c0_10 = arith.constant 0 : index
    %c0_11 = arith.constant 0 : index
    %9 = vector.load %arg1[%c0_10, %c0_11] : memref<256x256xf32, #tpu.memory_space<vmem>>, vector<256x256xf32>
    %cst_12 = arith.constant dense<0.000000e+00> : vector<256x128xf32>
    %10 = tpu.matmul %9, %8, %cst_12 {dimension_numbers = #tpu.dot_dimension_numbers<[1], [0], [0], [1], [0, 0, 1, 1], [], []>} : vector<256x256xf32>, vector<256x128xf32>, vector<256x128xf32> -> vector<256x128xf32>
    %c0_13 = arith.constant 0 : index
    %c0_14 = arith.constant 0 : index
    %11 = vector.load %arg5[%c0_13, %c0_14] : memref<256x128xf32, #tpu.memory_space<vmem>>, vector<256x128xf32>
    %c1 = arith.constant 1 : index
    %c0_15 = arith.constant 0 : index
    %c0_16 = arith.constant 0 : index
    %12 = vector.load %arg3[%c1, %c0_15, %c0_16] : memref<3x128x128xf32, #tpu.memory_space<vmem>>, vector<1x128x128xf32>
    %13 = vector.shape_cast %12 : vector<1x128x128xf32> to vector<128x128xf32>
    %cst_17 = arith.constant dense<0.000000e+00> : vector<256x128xf32>
    %14 = tpu.matmul %10, %13, %cst_17 {dimension_numbers = #tpu.dot_dimension_numbers<[1], [0], [0], [1], [0, 0, 1, 1], [], []>} : vector<256x128xf32>, vector<128x128xf32>, vector<256x128xf32> -> vector<256x128xf32>
    %15 = arith.addf %11, %14 : vector<256x128xf32>
    %c0_18 = arith.constant 0 : index
    %c0_19 = arith.constant 0 : index
    %16 = vector.load %arg5[%c0_18, %c0_19] : memref<256x128xf32, #tpu.memory_space<vmem>>, vector<256x128xf32>
    tpu.vector_store %arg5[%c0_18, %c0_19], %15 {strides = array<i32>} : memref<256x128xf32, #tpu.memory_space<vmem>>, vector<256x128xf32>,
    %c0_20 = arith.constant 0 : index
    %c0_21 = arith.constant 0 : index
    %17 = vector.load %arg1[%c0_20, %c0_21] : memref<256x256xf32, #tpu.memory_space<vmem>>, vector<256x256xf32>
    %cst_22 = arith.constant dense<0.000000e+00> : vector<256x128xf32>
    %18 = tpu.matmul %17, %10, %cst_22 {dimension_numbers = #tpu.dot_dimension_numbers<[1], [0], [0], [1], [0, 0, 1, 1], [], []>} : vector<256x256xf32>, vector<256x128xf32>, vector<256x128xf32> -> vector<256x128xf32>
    %cst_23 = arith.constant 2.000000e+00 : f32
    %19 = vector.broadcast %cst_23 : f32 to vector<256x128xf32>
    %20 = arith.mulf %19, %18 : vector<256x128xf32>
    %21 = arith.subf %20, %8 : vector<256x128xf32>
    %c0_24 = arith.constant 0 : index
    %c0_25 = arith.constant 0 : index
    %22 = vector.load %arg5[%c0_24, %c0_25] : memref<256x128xf32, #tpu.memory_space<vmem>>, vector<256x128xf32>
    %c2 = arith.constant 2 : index
    %c0_26 = arith.constant 0 : index
    %c0_27 = arith.constant 0 : index
    %23 = vector.load %arg3[%c2, %c0_26, %c0_27] : memref<3x128x128xf32, #tpu.memory_space<vmem>>, vector<1x128x128xf32>
    %24 = vector.shape_cast %23 : vector<1x128x128xf32> to vector<128x128xf32>
    %cst_28 = arith.constant dense<0.000000e+00> : vector<256x128xf32>
    %25 = tpu.matmul %21, %24, %cst_28 {dimension_numbers = #tpu.dot_dimension_numbers<[1], [0], [0], [1], [0, 0, 1, 1], [], []>} : vector<256x128xf32>, vector<128x128xf32>, vector<256x128xf32> -> vector<256x128xf32>
    %26 = arith.addf %22, %25 : vector<256x128xf32>
    %c0_29 = arith.constant 0 : index
    %c0_30 = arith.constant 0 : index
    %27 = vector.load %arg5[%c0_29, %c0_30] : memref<256x128xf32, #tpu.memory_space<vmem>>, vector<256x128xf32>
    tpu.vector_store %arg5[%c0_29, %c0_30], %26 {strides = array<i32>} : memref<256x128xf32, #tpu.memory_space<vmem>>, vector<256x128xf32>,
    return
  }
  func.func @transform_0(%arg0: i32) -> (i32, i32) {
    %c0_i32 = arith.constant 0 : i32
    %c0_i32_0 = arith.constant 0 : i32
    %c0_i32_1 = arith.constant 0 : i32
    return %c0_i32, %c0_i32_0 : i32, i32
  }
  func.func @transform_1(%arg0: i32) -> (i32, i32) {
    %c0_i32 = arith.constant 0 : i32
    %c0_i32_0 = arith.constant 0 : i32
    %c0_i32_1 = arith.constant 0 : i32
    return %c0_i32, %c0_i32_0 : i32, i32
  }
  func.func @transform_2(%arg0: i32) -> (i32, i32, i32) {
    %c0_i32 = arith.constant 0 : i32
    %c0_i32_0 = arith.constant 0 : i32
    %c0_i32_1 = arith.constant 0 : i32
    %c0_i32_2 = arith.constant 0 : i32
    return %c0_i32, %c0_i32_0, %c0_i32_1 : i32, i32, i32
  }
  func.func @transform_3(%arg0: i32) -> (i32, i32) {
    %c0_i32 = arith.constant 0 : i32
    %c0_i32_0 = arith.constant 0 : i32
    %c0_i32_1 = arith.constant 0 : i32
    return %c0_i32, %c0_i32_0 : i32, i32
  }
  func.func @transform_4(%arg0: i32) -> (i32, i32) {
    %c0_i32 = arith.constant 0 : i32
    %c0_i32_0 = arith.constant 0 : i32
    %c0_i32_1 = arith.constant 0 : i32
    return %c0_i32, %c0_i32_0 : i32, i32
  }
}

</mosaic_0001>

<llo_original>
// kernel: forward.1
$region0: #{forward.1}
  #allocation0 [shape = 'u32[]', space=smem, size = 0x4, offset = 0x4, fixed_abs, tag = 'smem constant byte address 0x4 - core index']
  #allocation1 [shape = 'u32[144,128]{1,0:T(1,128)}', space=vmem, size = 0x12000, scoped, tag = 'internal scratch']
  %s0 = inlined_call_operand.vmem [shape: f32[256,256], index: 0, kind: input, shape index: {}]
  %s1 = inlined_call_operand.vmem [shape: f32[256,128], index: 1, kind: input, shape index: {}]
  %s2 = inlined_call_operand.hbm [shape: f32[3,128,128], index: 2, kind: input, shape index: {}]
  %s3 = inlined_call_operand.vmem [shape: f32[1,128], index: 3, kind: input, shape index: {}]
  %s4 = inlined_call_operand.vmem [shape: f32[256,128], index: 4, kind: output, shape index: {}]
  %s5 = sld [smem:[#allocation0]]
  $region30: #{forward.1} parent=0
    _
  %s7 = ssub.s32 1, %s5
  %s8 = scalar_select 0, %s7, %s5
  $region1: #{forward.1} parent=0
    #allocation2 [shape = 'u8[196608]{0}', space=vmem, size = 0x30000, scoped, tag = 'input window, operand 2, single buffered']
    #allocation3 [shape = 's32[1]{0}', space=sflag, size = 0x4, scoped, tag = 'scoped memory for forward.1']
    %9 = vsyncpa [#allocation3], 0
    // Predicated region
    $region2: #{forward.1} parent=1 // pred_check
      _
    $region3: #{forward.1} parent=1 // pred_check_branch
      %11 = sbr.rel (0) target = $region5
    $region4: #{forward.1} parent=1 // pred_region
      _
    $region5: #{forward.1} parent=1 // pred_fallthru
      _
    // Predicated region
    $region6: #{forward.1} parent=1 // pred_check
      _
    $region7: #{forward.1} parent=1 // pred_check_branch
      %13 = sbr.rel (0) target = $region9
    $region8: #{forward.1} parent=1 // pred_region
      _
    $region9: #{forward.1} parent=1 // pred_fallthru
      _
    // Predicated region
    $region10: #{forward.1} parent=1 // pred_check
      _
    $region11: #{forward.1} parent=1 // pred_check_branch
      %15 = sbr.rel (0) target = $region13
    $region12: #{forward.1} parent=1 // pred_region
      %s17 = ssub.s32 6144, 6144
      %18 = vsyncadd [#allocation3], %s17
      %s19 = sshll.u32 [#allocation2], 4
      %s20 = int_to_ptr.vmem [resolvable:$true] %s19
      %25 = dma.hbm_to_vmem [thread:$0]  %s2, 6144, %s20, [#allocation3], 128, 128, 8
    $region13: #{forward.1} parent=1 // pred_fallthru
      _
    // Predicated region
    $region14: #{forward.1} parent=1 // pred_check
      _
    $region15: #{forward.1} parent=1 // pred_check_branch
      %27 = sbr.rel (0) target = $region17
    $region16: #{forward.1} parent=1 // pred_region
      _
    $region17: #{forward.1} parent=1 // pred_fallthru
      _
    // Predicated region
    $region18: #{forward.1} parent=1 // pred_check
      _
    $region19: #{forward.1} parent=1 // pred_check_branch
      %29 = sbr.rel (0) target = $region21
    $region20: #{forward.1} parent=1 // pred_region
      %30 = dma.done [#allocation3], 6144
    $region21: #{forward.1} parent=1 // pred_fallthru
      _
    %v31 = vld [vmem:[%s3] sm:$0x1]
    %v32 = vld [vmem:[%s1] sm:$0xff]
    %v33 = vld [vmem:[%s1 + $0x8] sm:$0xff]
    %v34 = vld [vmem:[%s1 + $0x10] sm:$0xff]
    %v35 = vld [vmem:[%s1 + $0x18] sm:$0xff]
    %v36 = vld [vmem:[%s1 + $0x20] sm:$0xff]
    %v37 = vld [vmem:[%s1 + $0x28] sm:$0xff]
    %v38 = vld [vmem:[%s1 + $0x30] sm:$0xff]
    %v39 = vld [vmem:[%s1 + $0x38] sm:$0xff]
    %v40 = vld [vmem:[%s1 + $0x40] sm:$0xff]
    %v41 = vld [vmem:[%s1 + $0x48] sm:$0xff]
    %v42 = vld [vmem:[%s1 + $0x50] sm:$0xff]
    %v43 = vld [vmem:[%s1 + $0x58] sm:$0xff]
    %v44 = vld [vmem:[%s1 + $0x60] sm:$0xff]
    %v45 = vld [vmem:[%s1 + $0x68] sm:$0xff]
    %v46 = vld [vmem:[%s1 + $0x70] sm:$0xff]
    %v47 = vld [vmem:[%s1 + $0x78] sm:$0xff]
    %v48 = vld [vmem:[%s1 + $0x80] sm:$0xff]
    %v49 = vld [vmem:[%s1 + $0x88] sm:$0xff]
    %v50 = vld [vmem:[%s1 + $0x90] sm:$0xff]
    %v51 = vld [vmem:[%s1 + $0x98] sm:$0xff]
    %v52 = vld [vmem:[%s1 + $0xa0] sm:$0xff]
    %v53 = vld [vmem:[%s1 + $0xa8] sm:$0xff]
    %v54 = vld [vmem:[%s1 + $0xb0] sm:$0xff]
    %v55 = vld [vmem:[%s1 + $0xb8] sm:$0xff]
    %v56 = vld [vmem:[%s1 + $0xc0] sm:$0xff]
    %v57 = vld [vmem:[%s1 + $0xc8] sm:$0xff]
    %v58 = vld [vmem:[%s1 + $0xd0] sm:$0xff]
    %v59 = vld [vmem:[%s1 + $0xd8] sm:$0xff]
    %v60 = vld [vmem:[%s1 + $0xe0] sm:$0xff]
    %v61 = vld [vmem:[%s1 + $0xe8] sm:$0xff]
    %v62 = vld [vmem:[%s1 + $0xf0] sm:$0xff]
    %v63 = vld [vmem:[%s1 + $0xf8] sm:$0xff]
    %v64 = vld [vmem:[#allocation2] sm:$0xff]
    %v65 = vld [vmem:[#allocation2 + $0x8] sm:$0xff]
    %v66 = vld [vmem:[#allocation2 + $0x10] sm:$0xff]
    %v67 = vld [vmem:[#allocation2 + $0x18] sm:$0xff]
    %v68 = vld [vmem:[#allocation2 + $0x20] sm:$0xff]
    %v69 = vld [vmem:[#allocation2 + $0x28] sm:$0xff]
    %v70 = vld [vmem:[#allocation2 + $0x30] sm:$0xff]
    %v71 = vld [vmem:[#allocation2 + $0x38] sm:$0xff]
    %v72 = vld [vmem:[#allocation2 + $0x40] sm:$0xff]
    %v73 = vld [vmem:[#allocation2 + $0x48] sm:$0xff]
    %v74 = vld [vmem:[#allocation2 + $0x50] sm:$0xff]
    %v75 = vld [vmem:[#allocation2 + $0x58] sm:$0xff]
    %v76 = vld [vmem:[#allocation2 + $0x60] sm:$0xff]
    %v77 = vld [vmem:[#allocation2 + $0x68] sm:$0xff]
    %v78 = vld [vmem:[#allocation2 + $0x70] sm:$0xff]
    %v79 = vld [vmem:[#allocation2 + $0x78] sm:$0xff]
    %80 = vmatprep.subr.mxu0 0.0
    %81 = vmatpush1.msra.mxu0 %v64
    %82 = vmatprep.subr.mxu0 0.0
    %83 = vmatpush1.msra.mxu0 %v65
    %84 = vmatprep.subr.mxu0 0.0
    %85 = vmatpush1.msra.mxu0 %v66
    %86 = vmatprep.subr.mxu0 0.0
    %87 = vmatpush1.msra.mxu0 %v67
    %88 = vmatprep.subr.mxu0 0.0
    %89 = vmatpush1.msra.mxu0 %v68
    %90 = vmatprep.subr.mxu0 0.0
    %91 = vmatpush1.msra.mxu0 %v69
    %92 = vmatprep.subr.mxu0 0.0
    %93 = vmatpush1.msra.mxu0 %v70
    %94 = vmatprep.subr.mxu0 0.0
    %95 = vmatpush1.msra.mxu0 %v71
    %96 = vmatprep.subr.mxu0 0.0
    %97 = vmatpush1.msra.mxu0 %v72
    %98 = vmatprep.subr.mxu0 0.0
    %99 = vmatpush1.msra.mxu0 %v73
    %100 = vmatprep.subr.mxu0 0.0
    %101 = vmatpush1.msra.mxu0 %v74
    %102 = vmatprep.subr.mxu0 0.0
    %103 = vmatpush1.msra.mxu0 %v75
    %104 = vmatprep.subr.mxu0 0.0
    %105 = vmatpush1.msra.mxu0 %v76
    %106 = vmatprep.subr.mxu0 0.0
    %107 = vmatpush1.msra.mxu0 %v77
    %108 = vmatprep.subr.mxu0 0.0
    %109 = vmatpush1.msra.mxu0 %v78
    %110 = vmatprep.subr.mxu0 0.0
    %111 = vmatpush1.msra.mxu0 %v79
    %112 = vmatprep.subr.mxu0 0.0
    %113 = vmatpush1.msra.mxu0 0.0
    %114 = vmatprep.subr.mxu0 0.0
    %115 = vmatpush1.msra.mxu0 0.0
    %116 = vmatprep.subr.mxu0 0.0
    %117 = vmatpush1.msra.mxu0 0.0
    %118 = vmatprep.subr.mxu0 0.0
    %119 = vmatpush1.msra.mxu0 0.0
    %120 = vmatprep.subr.mxu0 0.0
    %121 = vmatpush1.msra.mxu0 0.0
    %122 = vmatprep.subr.mxu0 0.0
    %123 = vmatpush1.msra.mxu0 0.0
    %124 = vmatprep.subr.mxu0 0.0
    %125 = vmatpush1.msra.mxu0 0.0
    %126 = vmatprep.subr.mxu0 0.0
    %127 = vmatpush1.msra.mxu0 0.0
    %128 = vmatprep.subr.mxu0 0.0
    %129 = vmatpush1.msra.mxu0 0.0
    %130 = vmatprep.subr.mxu0 0.0
    %131 = vmatpush1.msra.mxu0 0.0
    %132 = vmatprep.subr.mxu0 0.0
    %133 = vmatpush1.msra.mxu0 0.0
    %134 = vmatprep.subr.mxu0 0.0
    %135 = vmatpush1.msra.mxu0 0.0
    %136 = vmatprep.subr.mxu0 0.0
    %137 = vmatpush1.msra.mxu0 0.0
    %138 = vmatprep.subr.mxu0 0.0
    %139 = vmatpush1.msra.mxu0 0.0
    %140 = vmatprep.subr.mxu0 0.0
    %141 = vmatpush1.msra.mxu0 0.0
    %142 = vmatprep.subr.mxu0 0.0
    %143 = vmatpush1.msra.mxu0 0.0
    %144 = vmatprep.mubr.f32.mxu0 0.0
    %145 = vmatmul.mubr.f32.gmra.mrb[0].mxu0 %v32
    %v146 = vpop.f32.mrb[0].mxu0
    %v147 = vadd.f32 0.0, %v146
    %v148 = vpop.f32.mrb[0].mxu0
    %149 = vmatprep.mubr.f32.mxu0 0.0
    %150 = vmatmul.mubr.f32.gmra.mrb[0].mxu0 %v33
    %v151 = vpop.f32.mrb[0].mxu0
    %v152 = vadd.f32 0.0, %v151
    %v153 = vpop.f32.mrb[0].mxu0
    %154 = vmatprep.mubr.f32.mxu0 0.0
    %155 = vmatmul.mubr.f32.gmra.mrb[0].mxu0 %v34
    %v156 = vpop.f32.mrb[0].mxu0
    %v157 = vadd.f32 0.0, %v156
    %v158 = vpop.f32.mrb[0].mxu0
    %159 = vmatprep.mubr.f32.mxu0 0.0
    %160 = vmatmul.mubr.f32.gmra.mrb[0].mxu0 %v35
    %v161 = vpop.f32.mrb[0].mxu0
    %v162 = vadd.f32 0.0, %v161
    %v163 = vpop.f32.mrb[0].mxu0
    %164 = vmatprep.mubr.f32.mxu0 0.0
    %165 = vmatmul.mubr.f32.gmra.mrb[0].mxu0 %v36
    %v166 = vpop.f32.mrb[0].mxu0
    %v167 = vadd.f32 0.0, %v166
    %v168 = vpop.f32.mrb[0].mxu0
    %169 = vmatprep.mubr.f32.mxu0 0.0
    %170 = vmatmul.mubr.f32.gmra.mrb[0].mxu0 %v37
    %v171 = vpop.f32.mrb[0].mxu0
    %v172 = vadd.f32 0.0, %v171
    %v173 = vpop.f32.mrb[0].mxu0
    %174 = vmatprep.mubr.f32.mxu0 0.0
    %175 = vmatmul.mubr.f32.gmra.mrb[0].mxu0 %v38
    %v176 = vpop.f32.mrb[0].mxu0
    %v177 = vadd.f32 0.0, %v176
    %v178 = vpop.f32.mrb[0].mxu0
    %179 = vmatprep.mubr.f32.mxu0 0.0
    %180 = vmatmul.mubr.f32.gmra.mrb[0].mxu0 %v39
    %v181 = vpop.f32.mrb[0].mxu0
    %v182 = vadd.f32 0.0, %v181
    %v183 = vpop.f32.mrb[0].mxu0
    %184 = vmatprep.mubr.f32.mxu0 0.0
    %185 = vmatmul.mubr.f32.gmra.mrb[0].mxu0 %v40
    %v186 = vpop.f32.mrb[0].mxu0
    %v187 = vadd.f32 0.0, %v186
    %v188 = vpop.f32.mrb[0].mxu0
    %189 = vmatprep.mubr.f32.mxu0 0.0
    %190 = vmatmul.mubr.f32.gmra.mrb[0].mxu0 %v41
    %v191 = vpop.f32.mrb[0].mxu0
    %v192 = vadd.f32 0.0, %v191
    %v193 = vpop.f32.mrb[0].mxu0
    %194 = vmatprep.mubr.f32.mxu0 0.0
    %195 = vmatmul.mubr.f32.gmra.mrb[0].mxu0 %v42
    %v196 = vpop.f32.mrb[0].mxu0
    %v197 = vadd.f32 0.0, %v196
    %v198 = vpop.f32.mrb[0].mxu0
    %199 = vmatprep.mubr.f32.mxu0 0.0
    %200 = vmatmul.mubr.f32.gmra.mrb[0].mxu0 %v43
    %v201 = vpop.f32.mrb[0].mxu0
    %v202 = vadd.f32 0.0, %v201
    %v203 = vpop.f32.mrb[0].mxu0
    %204 = vmatprep.mubr.f32.mxu0 0.0
    %205 = vmatmul.mubr.f32.gmra.mrb[0].mxu0 %v44
    %v206 = vpop.f32.mrb[0].mxu0
    %v207 = vadd.f32 0.0, %v206
    %v208 = vpop.f32.mrb[0].mxu0
    %209 = vmatprep.mubr.f32.mxu0 0.0
    %210 = vmatmul.mubr.f32.gmra.mrb[0].mxu0 %v45
    %v211 = vpop.f32.mrb[0].mxu0
    %v212 = vadd.f32 0.0, %v211
    %v213 = vpop.f32.mrb[0].mxu0
    %214 = vmatprep.mubr.f32.mxu0 0.0
    %215 = vmatmul.mubr.f32.gmra.mrb[0].mxu0 %v46
    %v216 = vpop.f32.mrb[0].mxu0
    %v217 = vadd.f32 0.0, %v216
    %v218 = vpop.f32.mrb[0].mxu0
    %219 = vmatprep.mubr.f32.mxu0 0.0
    %220 = vmatmul.mubr.f32.gmra.mrb[0].mxu0 %v47
    %v221 = vpop.f32.mrb[0].mxu0
    %v222 = vadd.f32 0.0, %v221
    %v223 = vpop.f32.mrb[0].mxu0
    %224 = vmatprep.mubr.f32.mxu0 0.0
    %225 = vmatmul.mubr.f32.gmra.mrb[0].mxu0 %v48
    %v226 = vpop.f32.mrb[0].mxu0
    %v227 = vadd.f32 0.0, %v226
    %v228 = vpop.f32.mrb[0].mxu0
    %229 = vmatprep.mubr.f32.mxu0 0.0
    %230 = vmatmul.mubr.f32.gmra.mrb[0].mxu0 %v49
    %v231 = vpop.f32.mrb[0].mxu0
    %v232 = vadd.f32 0.0, %v231
    %v233 = vpop.f32.mrb[0].mxu0
    %234 = vmatprep.mubr.f32.mxu0 0.0
    %235 = vmatmul.mubr.f32.gmra.mrb[0].mxu0 %v50
    %v236 = vpop.f32.mrb[0].mxu0
    %v237 = vadd.f32 0.0, %v236
    %v238 = vpop.f32.mrb[0].mxu0
    %239 = vmatprep.mubr.f32.mxu0 0.0
    %240 = vmatmul.mubr.f32.gmra.mrb[0].mxu0 %v51
    %v241 = vpop.f32.mrb[0].mxu0
    %v242 = vadd.f32 0.0, %v241
    %v243 = vpop.f32.mrb[0].mxu0
    %244 = vmatprep.mubr.f32.mxu0 0.0
    %245 = vmatmul.mubr.f32.gmra.mrb[0].mxu0 %v52
    %v246 = vpop.f32.mrb[0].mxu0
    %v247 = vadd.f32 0.0, %v246
    %v248 = vpop.f32.mrb[0].mxu0
    %249 = vmatprep.mubr.f32.mxu0 0.0
    %250 = vmatmul.mubr.f32.gmra.mrb[0].mxu0 %v53
    %v251 = vpop.f32.mrb[0].mxu0
    %v252 = vadd.f32 0.0, %v251
    %v253 = vpop.f32.mrb[0].mxu0
    %254 = vmatprep.mubr.f32.mxu0 0.0
    %255 = vmatmul.mubr.f32.gmra.mrb[0].mxu0 %v54
    %v256 = vpop.f32.mrb[0].mxu0
    %v257 = vadd.f32 0.0, %v256
    %v258 = vpop.f32.mrb[0].mxu0
    %259 = vmatprep.mubr.f32.mxu0 0.0
    %260 = vmatmul.mubr.f32.gmra.mrb[0].mxu0 %v55
    %v261 = vpop.f32.mrb[0].mxu0
    %v262 = vadd.f32 0.0, %v261
    %v263 = vpop.f32.mrb[0].mxu0
    %264 = vmatprep.mubr.f32.mxu0 0.0
    %265 = vmatmul.mubr.f32.gmra.mrb[0].mxu0 %v56
    %v266 = vpop.f32.mrb[0].mxu0
    %v267 = vadd.f32 0.0, %v266
    %v268 = vpop.f32.mrb[0].mxu0
    %269 = vmatprep.mubr.f32.mxu0 0.0
    %270 = vmatmul.mubr.f32.gmra.mrb[0].mxu0 %v57
    %v271 = vpop.f32.mrb[0].mxu0
    %v272 = vadd.f32 0.0, %v271
    %v273 = vpop.f32.mrb[0].mxu0
    %274 = vmatprep.mubr.f32.mxu0 0.0
    %275 = vmatmul.mubr.f32.gmra.mrb[0].mxu0 %v58
    %v276 = vpop.f32.mrb[0].mxu0
    %v277 = vadd.f32 0.0, %v276
    %v278 = vpop.f32.mrb[0].mxu0
    %279 = vmatprep.mubr.f32.mxu0 0.0
    %280 = vmatmul.mubr.f32.gmra.mrb[0].mxu0 %v59
    %v281 = vpop.f32.mrb[0].mxu0
    %v282 = vadd.f32 0.0, %v281
    %v283 = vpop.f32.mrb[0].mxu0
    %284 = vmatprep.mubr.f32.mxu0 0.0
    %285 = vmatmul.mubr.f32.gmra.mrb[0].mxu0 %v60
    %v286 = vpop.f32.mrb[0].mxu0
    %v287 = vadd.f32 0.0, %v286
    %v288 = vpop.f32.mrb[0].mxu0
    %289 = vmatprep.mubr.f32.mxu0 0.0
    %290 = vmatmul.mubr.f32.gmra.mrb[0].mxu0 %v61
    %v291 = vpop.f32.mrb[0].mxu0
    %v292 = vadd.f32 0.0, %v291
    %v293 = vpop.f32.mrb[0].mxu0
    %294 = vmatprep.mubr.f32.mxu0 0.0
    %295 = vmatmul.mubr.f32.gmra.mrb[0].mxu0 %v62
    %v296 = vpop.f32.mrb[0].mxu0
    %v297 = vadd.f32 0.0, %v296
    %v298 = vpop.f32.mrb[0].mxu0
    %299 = vmatprep.mubr.f32.mxu0 0.0
    %300 = vmatmul.mubr.f32.gmra.mrb[0].mxu0 %v63
    %v301 = vpop.f32.mrb[0].mxu0
    %v302 = vadd.f32 0.0, %v301
    %v303 = vpop.f32.mrb[0].mxu0
    %304 = vdwg.mxu0
    %v306 = vlaneseq
    %v307 = vshrl.u32 %v306, 7
    %v308 = vsub.s32 0, %v307
    %v309 = vrot.slane %v31, %v308
    %v311 = vadd.f32 %v309, %v147
    %v312 = vadd.f32 %v309, %v152
    %v313 = vadd.f32 %v309, %v157
    %v314 = vadd.f32 %v309, %v162
    %v315 = vadd.f32 %v309, %v167
    %v316 = vadd.f32 %v309, %v172
    %v317 = vadd.f32 %v309, %v177
    %v318 = vadd.f32 %v309, %v182
    %v319 = vadd.f32 %v309, %v187
    %v320 = vadd.f32 %v309, %v192
    %v321 = vadd.f32 %v309, %v197
    %v322 = vadd.f32 %v309, %v202
    %v323 = vadd.f32 %v309, %v207
    %v324 = vadd.f32 %v309, %v212
    %v325 = vadd.f32 %v309, %v217
    %v326 = vadd.f32 %v309, %v222
    %v327 = vadd.f32 %v309, %v227
    %v328 = vadd.f32 %v309, %v232
    %v329 = vadd.f32 %v309, %v237
    %v330 = vadd.f32 %v309, %v242
    %v331 = vadd.f32 %v309, %v247
    %v332 = vadd.f32 %v309, %v252
    %v333 = vadd.f32 %v309, %v257
    %v334 = vadd.f32 %v309, %v262
    %v335 = vadd.f32 %v309, %v267
    %v336 = vadd.f32 %v309, %v272
    %v337 = vadd.f32 %v309, %v277
    %v338 = vadd.f32 %v309, %v282
    %v339 = vadd.f32 %v309, %v287
    %v340 = vadd.f32 %v309, %v292
    %v341 = vadd.f32 %v309, %v297
    %v342 = vadd.f32 %v309, %v302
    %343 = vst [vmem:[%s4] sm:$0xff] %v311
    %344 = vst [vmem:[%s4 + $0x8] sm:$0xff] %v312
    %345 = vst [vmem:[%s4 + $0x10] sm:$0xff] %v313
    %346 = vst [vmem:[%s4 + $0x18] sm:$0xff] %v314
    %347 = vst [vmem:[%s4 + $0x20] sm:$0xff] %v315
    %348 = vst [vmem:[%s4 + $0x28] sm:$0xff] %v316
    %349 = vst [vmem:[%s4 + $0x30] sm:$0xff] %v317
    %350 = vst [vmem:[%s4 + $0x38] sm:$0xff] %v318
    %351 = vst [vmem:[%s4 + $0x40] sm:$0xff] %v319
    %352 = vst [vmem:[%s4 + $0x48] sm:$0xff] %v320
    %353 = vst [vmem:[%s4 + $0x50] sm:$0xff] %v321
    %354 = vst [vmem:[%s4 + $0x58] sm:$0xff] %v322
    %355 = vst [vmem:[%s4 + $0x60] sm:$0xff] %v323
    %356 = vst [vmem:[%s4 + $0x68] sm:$0xff] %v324
    %357 = vst [vmem:[%s4 + $0x70] sm:$0xff] %v325
    %358 = vst [vmem:[%s4 + $0x78] sm:$0xff] %v326
    %359 = vst [vmem:[%s4 + $0x80] sm:$0xff] %v327
    %360 = vst [vmem:[%s4 + $0x88] sm:$0xff] %v328
    %361 = vst [vmem:[%s4 + $0x90] sm:$0xff] %v329
    %362 = vst [vmem:[%s4 + $0x98] sm:$0xff] %v330
    %363 = vst [vmem:[%s4 + $0xa0] sm:$0xff] %v331
    %364 = vst [vmem:[%s4 + $0xa8] sm:$0xff] %v332
    %365 = vst [vmem:[%s4 + $0xb0] sm:$0xff] %v333
    %366 = vst [vmem:[%s4 + $0xb8] sm:$0xff] %v334
    %367 = vst [vmem:[%s4 + $0xc0] sm:$0xff] %v335
    %368 = vst [vmem:[%s4 + $0xc8] sm:$0xff] %v336
    %369 = vst [vmem:[%s4 + $0xd0] sm:$0xff] %v337
    %370 = vst [vmem:[%s4 + $0xd8] sm:$0xff] %v338
    %371 = vst [vmem:[%s4 + $0xe0] sm:$0xff] %v339
    %372 = vst [vmem:[%s4 + $0xe8] sm:$0xff] %v340
    %373 = vst [vmem:[%s4 + $0xf0] sm:$0xff] %v341
    %374 = vst [vmem:[%s4 + $0xf8] sm:$0xff] %v342
    %v375 = vld [vmem:[%s1] sm:$0xff]
    %v376 = vld [vmem:[%s1 + $0x8] sm:$0xff]
    %v377 = vld [vmem:[%s1 + $0x10] sm:$0xff]
    %v378 = vld [vmem:[%s1 + $0x18] sm:$0xff]
    %v379 = vld [vmem:[%s1 + $0x20] sm:$0xff]
    %v380 = vld [vmem:[%s1 + $0x28] sm:$0xff]
    %v381 = vld [vmem:[%s1 + $0x30] sm:$0xff]
    %v382 = vld [vmem:[%s1 + $0x38] sm:$0xff]
    %v383 = vld [vmem:[%s1 + $0x40] sm:$0xff]
    %v384 = vld [vmem:[%s1 + $0x48] sm:$0xff]
    %v385 = vld [vmem:[%s1 + $0x50] sm:$0xff]
    %v386 = vld [vmem:[%s1 + $0x58] sm:$0xff]
    %v387 = vld [vmem:[%s1 + $0x60] sm:$0xff]
    %v388 = vld [vmem:[%s1 + $0x68] sm:$0xff]
    %v389 = vld [vmem:[%s1 + $0x70] sm:$0xff]
    %v390 = vld [vmem:[%s1 + $0x78] sm:$0xff]
    %v391 = vld [vmem:[%s1 + $0x80] sm:$0xff]
    %v392 = vld [vmem:[%s1 + $0x88] sm:$0xff]
    %v393 = vld [vmem:[%s1 + $0x90] sm:$0xff]
    %v394 = vld [vmem:[%s1 + $0x98] sm:$0xff]
    %v395 = vld [vmem:[%s1 + $0xa0] sm:$0xff]
    %v396 = vld [vmem:[%s1 + $0xa8] sm:$0xff]
    %v397 = vld [vmem:[%s1 + $0xb0] sm:$0xff]
    %v398 = vld [vmem:[%s1 + $0xb8] sm:$0xff]
    %v399 = vld [vmem:[%s1 + $0xc0] sm:$0xff]
    %v400 = vld [vmem:[%s1 + $0xc8] sm:$0xff]
    %v401 = vld [vmem:[%s1 + $0xd0] sm:$0xff]
    %v402 = vld [vmem:[%s1 + $0xd8] sm:$0xff]
    %v403 = vld [vmem:[%s1 + $0xe0] sm:$0xff]
    %v404 = vld [vmem:[%s1 + $0xe8] sm:$0xff]
    %v405 = vld [vmem:[%s1 + $0xf0] sm:$0xff]
    %v406 = vld [vmem:[%s1 + $0xf8] sm:$0xff]
    %v407 = vld [vmem:[%s0] sm:$0xff]
    %v408 = vld [vmem:[%s0 + $0x8] sm:$0xff]
    %v409 = vld [vmem:[%s0 + $0x10] sm:$0xff]
    %v410 = vld [vmem:[%s0 + $0x18] sm:$0xff]
    %v411 = vld [vmem:[%s0 + $0x20] sm:$0xff]
    %v412 = vld [vmem:[%s0 + $0x28] sm:$0xff]
    %v413 = vld [vmem:[%s0 + $0x30] sm:$0xff]
    %v414 = vld [vmem:[%s0 + $0x38] sm:$0xff]
    %v415 = vld [vmem:[%s0 + $0x40] sm:$0xff]
    %v416 = vld [vmem:[%s0 + $0x48] sm:$0xff]
    %v417 = vld [vmem:[%s0 + $0x50] sm:$0xff]
    %v418 = vld [vmem:[%s0 + $0x58] sm:$0xff]
    %v419 = vld [vmem:[%s0 + $0x60] sm:$0xff]
    %v420 = vld [vmem:[%s0 + $0x68] sm:$0xff]
    %v421 = vld [vmem:[%s0 + $0x70] sm:$0xff]
    %v422 = vld [vmem:[%s0 + $0x78] sm:$0xff]
    %v423 = vld [vmem:[%s0 + $0x80] sm:$0xff]
    %v424 = vld [vmem:[%s0 + $0x88] sm:$0xff]
    %v425 = vld [vmem:[%s0 + $0x90] sm:$0xff]
    %v426 = vld [vmem:[%s0 + $0x98] sm:$0xff]
    %v427 = vld [vmem:[%s0 + $0xa0] sm:$0xff]
    %v428 = vld [vmem:[%s0 + $0xa8] sm:$0xff]
    %v429 = vld [vmem:[%s0 + $0xb0] sm:$0xff]
    %v430 = vld [vmem:[%s0 + $0xb8] sm:$0xff]
    %v431 = vld [vmem:[%s0 + $0xc0] sm:$0xff]
    %v432 = vld [vmem:[%s0 + $0xc8] sm:$0xff]
    %v433 = vld [vmem:[%s0 + $0xd0] sm:$0xff]
    %v434 = vld [vmem:[%s0 + $0xd8] sm:$0xff]
    %v435 = vld [vmem:[%s0 + $0xe0] sm:$0xff]
    %v436 = vld [vmem:[%s0 + $0xe8] sm:$0xff]
    %v437 = vld [vmem:[%s0 + $0xf0] sm:$0xff]
    %v438 = vld [vmem:[%s0 + $0xf8] sm:$0xff]
    %v439 = vld [vmem:[%s0 + $0x100] sm:$0xff]
    %v440 = vld [vmem:[%s0 + $0x108] sm:$0xff]
    %v441 = vld [vmem:[%s0 + $0x110] sm:$0xff]
    %v442 = vld [vmem:[%s0 + $0x118] sm:$0xff]
    %v443 = vld [vmem:[%s0 + $0x120] sm:$0xff]
    %v444 = vld [vmem:[%s0 + $0x128] sm:$0xff]
    %v445 = vld [vmem:[%s0 + $0x130] sm:$0xff]
    %v446 = vld [vmem:[%s0 + $0x138] sm:$0xff]
    %v447 = vld [vmem:[%s0 + $0x140] sm:$0xff]
    %v448 = vld [vmem:[%s0 + $0x148] sm:$0xff]
    %v449 = vld [vmem:[%s0 + $0x150] sm:$0xff]
    %v450 = vld [vmem:[%s0 + $0x158] sm:$0xff]
    %v451 = vld [vmem:[%s0 + $0x160] sm:$0xff]
    %v452 = vld [vmem:[%s0 + $0x168] sm:$0xff]
    %v453 = vld [vmem:[%s0 + $0x170] sm:$0xff]
    %v454 = vld [vmem:[%s0 + $0x178] sm:$0xff]
    %v455 = vld [vmem:[%s0 + $0x180] sm:$0xff]
    %v456 = vld [vmem:[%s0 + $0x188] sm:$0xff]
    %v457 = vld [vmem:[%s0 + $0x190] sm:$0xff]
    %v458 = vld [vmem:[%s0 + $0x198] sm:$0xff]
    %v459 = vld [vmem:[%s0 + $0x1a0] sm:$0xff]
    %v460 = vld [vmem:[%s0 + $0x1a8] sm:$0xff]
    %v461 = vld [vmem:[%s0 + $0x1b0] sm:$0xff]
    %v462 = vld [vmem:[%s0 + $0x1b8] sm:$0xff]
    %v463 = vld [vmem:[%s0 + $0x1c0] sm:$0xff]
    %v464 = vld [vmem:[%s0 + $0x1c8] sm:$0xff]
    %v465 = vld [vmem:[%s0 + $0x1d0] sm:$0xff]
    %v466 = vld [vmem:[%s0 + $0x1d8] sm:$0xff]
    %v467 = vld [vmem:[%s0 + $0x1e0] sm:$0xff]
    %v468 = vld [vmem:[%s0 + $0x1e8] sm:$0xff]
    %v469 = vld [vmem:[%s0 + $0x1f0] sm:$0xff]
    %v470 = vld [vmem:[%s0 + $0x1f8] sm:$0xff]
    %471 = vmatprep.subr.mxu0 0.0
    %472 = vmatpush1.msra.mxu0 %v375
    %473 = vmatprep.subr.mxu0 0.0
    %474 = vmatpush1.msra.mxu0 %v376
    %475 = vmatprep.subr.mxu0 0.0
    %476 = vmatpush1.msra.mxu0 %v377
    %477 = vmatprep.subr.mxu0 0.0
    %478 = vmatpush1.msra.mxu0 %v378
    %479 = vmatprep.subr.mxu0 0.0
    %480 = vmatpush1.msra.mxu0 %v379
    %481 = vmatprep.subr.mxu0 0.0
    %482 = vmatpush1.msra.mxu0 %v380
    %483 = vmatprep.subr.mxu0 0.0
    %484 = vmatpush1.msra.mxu0 %v381
    %485 = vmatprep.subr.mxu0 0.0
    %486 = vmatpush1.msra.mxu0 %v382
    %487 = vmatprep.subr.mxu0 0.0
    %488 = vmatpush1.msra.mxu0 %v383
    %489 = vmatprep.subr.mxu0 0.0
    %490 = vmatpush1.msra.mxu0 %v384
    %491 = vmatprep.subr.mxu0 0.0
    %492 = vmatpush1.msra.mxu0 %v385
    %493 = vmatprep.subr.mxu0 0.0
    %494 = vmatpush1.msra.mxu0 %v386
    %495 = vmatprep.subr.mxu0 0.0
    %496 = vmatpush1.msra.mxu0 %v387
    %497 = vmatprep.subr.mxu0 0.0
    %498 = vmatpush1.msra.mxu0 %v388
    %499 = vmatprep.subr.mxu0 0.0
    %500 = vmatpush1.msra.mxu0 %v389
    %501 = vmatprep.subr.mxu0 0.0
    %502 = vmatpush1.msra.mxu0 %v390
    %503 = vmatprep.subr.mxu0 0.0
    %504 = vmatpush1.msra.mxu0 %v391
    %505 = vmatprep.subr.mxu0 0.0
    %506 = vmatpush1.msra.mxu0 %v392
    %507 = vmatprep.subr.mxu0 0.0
    %508 = vmatpush1.msra.mxu0 %v393
    %509 = vmatprep.subr.mxu0 0.0
    %510 = vmatpush1.msra.mxu0 %v394
    %511 = vmatprep.subr.mxu0 0.0
    %512 = vmatpush1.msra.mxu0 %v395
    %513 = vmatprep.subr.mxu0 0.0
    %514 = vmatpush1.msra.mxu0 %v396
    %515 = vmatprep.subr.mxu0 0.0
    %516 = vmatpush1.msra.mxu0 %v397
    %517 = vmatprep.subr.mxu0 0.0
    %518 = vmatpush1.msra.mxu0 %v398
    %519 = vmatprep.subr.mxu0 0.0
    %520 = vmatpush1.msra.mxu0 %v399
    %521 = vmatprep.subr.mxu0 0.0
    %522 = vmatpush1.msra.mxu0 %v400
    %523 = vmatprep.subr.mxu0 0.0
    %524 = vmatpush1.msra.mxu0 %v401
    %525 = vmatprep.subr.mxu0 0.0
    %526 = vmatpush1.msra.mxu0 %v402
    %527 = vmatprep.subr.mxu0 0.0
    %528 = vmatpush1.msra.mxu0 %v403
    %529 = vmatprep.subr.mxu0 0.0
    %530 = vmatpush1.msra.mxu0 %v404
    %531 = vmatprep.subr.mxu0 0.0
    %532 = vmatpush1.msra.mxu0 %v405
    %533 = vmatprep.subr.mxu0 0.0
    %534 = vmatpush1.msra.mxu0 %v406
    %535 = vmatprep.mubr.f32.mxu0 %v408
    %536 = vmatmul.mubr.f32.gmra.mrb[0].mxu0 %v407
    %v537 = vpop.f32.mrb[0].mxu0
    %v538 = vadd.f32 0.0, %v537
    %v539 = vpop.f32.mrb[0].mxu0
    %540 = vmatprep.mubr.f32.mxu0 %v410
    %541 = vmatmul.mubr.f32.gmra.mrb[0].mxu0 %v409
    %v542 = vpop.f32.mrb[0].mxu0
    %v543 = vadd.f32 0.0, %v542
    %v544 = vpop.f32.mrb[0].mxu0
    %545 = vmatprep.mubr.f32.mxu0 %v412
    %546 = vmatmul.mubr.f32.gmra.mrb[0].mxu0 %v411
    %v547 = vpop.f32.mrb[0].mxu0
    %v548 = vadd.f32 0.0, %v547
    %v549 = vpop.f32.mrb[0].mxu0
    %550 = vmatprep.mubr.f32.mxu0 %v414
    %551 = vmatmul.mubr.f32.gmra.mrb[0].mxu0 %v413
    %v552 = vpop.f32.mrb[0].mxu0
    %v553 = vadd.f32 0.0, %v552
    %v554 = vpop.f32.mrb[0].mxu0
    %555 = vmatprep.mubr.f32.mxu0 %v416
    %556 = vmatmul.mubr.f32.gmra.mrb[0].mxu0 %v415
    %v557 = vpop.f32.mrb[0].mxu0
    %v558 = vadd.f32 0.0, %v557
    %v559 = vpop.f32.mrb[0].mxu0
    %560 = vmatprep.mubr.f32.mxu0 %v418
    %561 = vmatmul.mubr.f32.gmra.mrb[0].mxu0 %v417
    %v562 = vpop.f32.mrb[0].mxu0
    %v563 = vadd.f32 0.0, %v562
    %v564 = vpop.f32.mrb[0].mxu0
    %565 = vmatprep.mubr.f32.mxu0 %v420
    %566 = vmatmul.mubr.f32.gmra.mrb[0].mxu0 %v419
    %v567 = vpop.f32.mrb[0].mxu0
    %v568 = vadd.f32 0.0, %v567
    %v569 = vpop.f32.mrb[0].mxu0
    %570 = vmatprep.mubr.f32.mxu0 %v422
    %571 = vmatmul.mubr.f32.gmra.mrb[0].mxu0 %v421
    %v572 = vpop.f32.mrb[0].mxu0
    %v573 = vadd.f32 0.0, %v572
    %v574 = vpop.f32.mrb[0].mxu0
    %575 = vmatprep.mubr.f32.mxu0 %v424
    %576 = vmatmul.mubr.f32.gmra.mrb[0].mxu0 %v423
    %v577 = vpop.f32.mrb[0].mxu0
    %v578 = vadd.f32 0.0, %v577
    %v579 = vpop.f32.mrb[0].mxu0
    %580 = vmatprep.mubr.f32.mxu0 %v426
    %581 = vmatmul.mubr.f32.gmra.mrb[0].mxu0 %v425
    %v582 = vpop.f32.mrb[0].mxu0
    %v583 = vadd.f32 0.0, %v582
    %v584 = vpop.f32.mrb[0].mxu0
    %585 = vmatprep.mubr.f32.mxu0 %v428
    %586 = vmatmul.mubr.f32.gmra.mrb[0].mxu0 %v427
    %v587 = vpop.f32.mrb[0].mxu0
    %v588 = vadd.f32 0.0, %v587
    %v589 = vpop.f32.mrb[0].mxu0
    %590 = vmatprep.mubr.f32.mxu0 %v430
    %591 = vmatmul.mubr.f32.gmra.mrb[0].mxu0 %v429
    %v592 = vpop.f32.mrb[0].mxu0
    %v593 = vadd.f32 0.0, %v592
    %v594 = vpop.f32.mrb[0].mxu0
    %595 = vmatprep.mubr.f32.mxu0 %v432
    %596 = vmatmul.mubr.f32.gmra.mrb[0].mxu0 %v431
    %v597 = vpop.f32.mrb[0].mxu0
    %v598 = vadd.f32 0.0, %v597
    %v599 = vpop.f32.mrb[0].mxu0
    %600 = vmatprep.mubr.f32.mxu0 %v434
    %601 = vmatmul.mubr.f32.gmra.mrb[0].mxu0 %v433
    %v602 = vpop.f32.mrb[0].mxu0
    %v603 = vadd.f32 0.0, %v602
    %v604 = vpop.f32.mrb[0].mxu0
    %605 = vmatprep.mubr.f32.mxu0 %v436
    %606 = vmatmul.mubr.f32.gmra.mrb[0].mxu0 %v435
    %v607 = vpop.f32.mrb[0].mxu0
    %v608 = vadd.f32 0.0, %v607
    %v609 = vpop.f32.mrb[0].mxu0
    %610 = vmatprep.mubr.f32.mxu0 %v438
    %611 = vmatmul.mubr.f32.gmra.mrb[0].mxu0 %v437
    %v612 = vpop.f32.mrb[0].mxu0
    %v613 = vadd.f32 0.0, %v612
    %v614 = vpop.f32.mrb[0].mxu0
    %615 = vmatprep.mubr.f32.mxu0 %v440
    %616 = vmatmul.mubr.f32.gmra.mrb[0].mxu0 %v439
    %v617 = vpop.f32.mrb[0].mxu0
    %v618 = vadd.f32 0.0, %v617
    %v619 = vpop.f32.mrb[0].mxu0
    %620 = vmatprep.mubr.f32.mxu0 %v442
    %621 = vmatmul.mubr.f32.gmra.mrb[0].mxu0 %v441
    %v622 = vpop.f32.mrb[0].mxu0
    %v623 = vadd.f32 0.0, %v622
    %v624 = vpop.f32.mrb[0].mxu0
    %625 = vmatprep.mubr.f32.mxu0 %v444
    %626 = vmatmul.mubr.f32.gmra.mrb[0].mxu0 %v443
    %v627 = vpop.f32.mrb[0].mxu0
    %v628 = vadd.f32 0.0, %v627
    %v629 = vpop.f32.mrb[0].mxu0
    %630 = vmatprep.mubr.f32.mxu0 %v446
    %631 = vmatmul.mubr.f32.gmra.mrb[0].mxu0 %v445
    %v632 = vpop.f32.mrb[0].mxu0
    %v633 = vadd.f32 0.0, %v632
    %v634 = vpop.f32.mrb[0].mxu0
    %635 = vmatprep.mubr.f32.mxu0 %v448
    %636 = vmatmul.mubr.f32.gmra.mrb[0].mxu0 %v447
    %v637 = vpop.f32.mrb[0].mxu0
    %v638 = vadd.f32 0.0, %v637
    %v639 = vpop.f32.mrb[0].mxu0
    %640 = vmatprep.mubr.f32.mxu0 %v450
    %641 = vmatmul.mubr.f32.gmra.mrb[0].mxu0 %v449
    %v642 = vpop.f32.mrb[0].mxu0
    %v643 = vadd.f32 0.0, %v642
    %v644 = vpop.f32.mrb[0].mxu0
    %645 = vmatprep.mubr.f32.mxu0 %v452
    %646 = vmatmul.mubr.f32.gmra.mrb[0].mxu0 %v451
    %v647 = vpop.f32.mrb[0].mxu0
    %v648 = vadd.f32 0.0, %v647
    %v649 = vpop.f32.mrb[0].mxu0
    %650 = vmatprep.mubr.f32.mxu0 %v454
    %651 = vmatmul.mubr.f32.gmra.mrb[0].mxu0 %v453
    %v652 = vpop.f32.mrb[0].mxu0
    %v653 = vadd.f32 0.0, %v652
    %v654 = vpop.f32.mrb[0].mxu0
    %655 = vmatprep.mubr.f32.mxu0 %v456
    %656 = vmatmul.mubr.f32.gmra.mrb[0].mxu0 %v455
    %v657 = vpop.f32.mrb[0].mxu0
    %v658 = vadd.f32 0.0, %v657
    %v659 = vpop.f32.mrb[0].mxu0
    %660 = vmatprep.mubr.f32.mxu0 %v458
    %661 = vmatmul.mubr.f32.gmra.mrb[0].mxu0 %v457
    %v662 = vpop.f32.mrb[0].mxu0
    %v663 = vadd.f32 0.0, %v662
    %v664 = vpop.f32.mrb[0].mxu0
    %665 = vmatprep.mubr.f32.mxu0 %v460
    %666 = vmatmul.mubr.f32.gmra.mrb[0].mxu0 %v459
    %v667 = vpop.f32.mrb[0].mxu0
    %v668 = vadd.f32 0.0, %v667
    %v669 = vpop.f32.mrb[0].mxu0
    %670 = vmatprep.mubr.f32.mxu0 %v462
    %671 = vmatmul.mubr.f32.gmra.mrb[0].mxu0 %v461
    %v672 = vpop.f32.mrb[0].mxu0
    %v673 = vadd.f32 0.0, %v672
    %v674 = vpop.f32.mrb[0].mxu0
    %675 = vmatprep.mubr.f32.mxu0 %v464
    %676 = vmatmul.mubr.f32.gmra.mrb[0].mxu0 %v463
    %v677 = vpop.f32.mrb[0].mxu0
    %v678 = vadd.f32 0.0, %v677
    %v679 = vpop.f32.mrb[0].mxu0
    %680 = vmatprep.mubr.f32.mxu0 %v466
    %681 = vmatmul.mubr.f32.gmra.mrb[0].mxu0 %v465
    %v682 = vpop.f32.mrb[0].mxu0
    %v683 = vadd.f32 0.0, %v682
    %v684 = vpop.f32.mrb[0].mxu0
    %685 = vmatprep.mubr.f32.mxu0 %v468
    %686 = vmatmul.mubr.f32.gmra.mrb[0].mxu0 %v467
    %v687 = vpop.f32.mrb[0].mxu0
    %v688 = vadd.f32 0.0, %v687
    %v689 = vpop.f32.mrb[0].mxu0
    %690 = vmatprep.mubr.f32.mxu0 %v470
    %691 = vmatmul.mubr.f32.gmra.mrb[0].mxu0 %v469
    %v692 = vpop.f32.mrb[0].mxu0
    %v693 = vadd.f32 0.0, %v692
    %v694 = vpop.f32.mrb[0].mxu0
    %695 = vdwg.mxu0
    %v696 = vld [vmem:[%s4] sm:$0xff]
    %v697 = vld [vmem:[%s4 + $0x8] sm:$0xff]
    %v698 = vld [vmem:[%s4 + $0x10] sm:$0xff]
    %v699 = vld [vmem:[%s4 + $0x18] sm:$0xff]
    %v700 = vld [vmem:[%s4 + $0x20] sm:$0xff]
    %v701 = vld [vmem:[%s4 + $0x28] sm:$0xff]
    %v702 = vld [vmem:[%s4 + $0x30] sm:$0xff]
    %v703 = vld [vmem:[%s4 + $0x38] sm:$0xff]
    %v704 = vld [vmem:[%s4 + $0x40] sm:$0xff]
    %v705 = vld [vmem:[%s4 + $0x48] sm:$0xff]
    %v706 = vld [vmem:[%s4 + $0x50] sm:$0xff]
    %v707 = vld [vmem:[%s4 + $0x58] sm:$0xff]
    %v708 = vld [vmem:[%s4 + $0x60] sm:$0xff]
    %v709 = vld [vmem:[%s4 + $0x68] sm:$0xff]
    %v710 = vld [vmem:[%s4 + $0x70] sm:$0xff]
    %v711 = vld [vmem:[%s4 + $0x78] sm:$0xff]
    %v712 = vld [vmem:[%s4 + $0x80] sm:$0xff]
    %v713 = vld [vmem:[%s4 + $0x88] sm:$0xff]
    %v714 = vld [vmem:[%s4 + $0x90] sm:$0xff]
    %v715 = vld [vmem:[%s4 + $0x98] sm:$0xff]
    %v716 = vld [vmem:[%s4 + $0xa0] sm:$0xff]
    %v717 = vld [vmem:[%s4 + $0xa8] sm:$0xff]
    %v718 = vld [vmem:[%s4 + $0xb0] sm:$0xff]
    %v719 = vld [vmem:[%s4 + $0xb8] sm:$0xff]
    %v720 = vld [vmem:[%s4 + $0xc0] sm:$0xff]
    %v721 = vld [vmem:[%s4 + $0xc8] sm:$0xff]
    %v722 = vld [vmem:[%s4 + $0xd0] sm:$0xff]
    %v723 = vld [vmem:[%s4 + $0xd8] sm:$0xff]
    %v724 = vld [vmem:[%s4 + $0xe0] sm:$0xff]
    %v725 = vld [vmem:[%s4 + $0xe8] sm:$0xff]
    %v726 = vld [vmem:[%s4 + $0xf0] sm:$0xff]
    %v727 = vld [vmem:[%s4 + $0xf8] sm:$0xff]
    %s728 = scalar_lea.vmem [#allocation2], 128
    %v729 = vld [vmem:[%s728] sm:$0xff]
    %v730 = vld [vmem:[%s728 + $0x8] sm:$0xff]
    %v731 = vld [vmem:[%s728 + $0x10] sm:$0xff]
    %v732 = vld [vmem:[%s728 + $0x18] sm:$0xff]
    %v733 = vld [vmem:[%s728 + $0x20] sm:$0xff]
    %v734 = vld [vmem:[%s728 + $0x28] sm:$0xff]
    %v735 = vld [vmem:[%s728 + $0x30] sm:$0xff]
    %v736 = vld [vmem:[%s728 + $0x38] sm:$0xff]
    %v737 = vld [vmem:[%s728 + $0x40] sm:$0xff]
    %v738 = vld [vmem:[%s728 + $0x48] sm:$0xff]
    %v739 = vld [vmem:[%s728 + $0x50] sm:$0xff]
    %v740 = vld [vmem:[%s728 + $0x58] sm:$0xff]
    %v741 = vld [vmem:[%s728 + $0x60] sm:$0xff]
    %v742 = vld [vmem:[%s728 + $0x68] sm:$0xff]
    %v743 = vld [vmem:[%s728 + $0x70] sm:$0xff]
    %v744 = vld [vmem:[%s728 + $0x78] sm:$0xff]
    %745 = vmatprep.subr.mxu0 0.0
    %746 = vmatpush1.msra.mxu0 %v729
    %747 = vmatprep.subr.mxu0 0.0
    %748 = vmatpush1.msra.mxu0 %v730
    %749 = vmatprep.subr.mxu0 0.0
    %750 = vmatpush1.msra.mxu0 %v731
    %751 = vmatprep.subr.mxu0 0.0
    %752 = vmatpush1.msra.mxu0 %v732
    %753 = vmatprep.subr.mxu0 0.0
    %754 = vmatpush1.msra.mxu0 %v733
    %755 = vmatprep.subr.mxu0 0.0
    %756 = vmatpush1.msra.mxu0 %v734
    %757 = vmatprep.subr.mxu0 0.0
    %758 = vmatpush1.msra.mxu0 %v735
    %759 = vmatprep.subr.mxu0 0.0
    %760 = vmatpush1.msra.mxu0 %v736
    %761 = vmatprep.subr.mxu0 0.0
    %762 = vmatpush1.msra.mxu0 %v737
    %763 = vmatprep.subr.mxu0 0.0
    %764 = vmatpush1.msra.mxu0 %v738
    %765 = vmatprep.subr.mxu0 0.0
    %766 = vmatpush1.msra.mxu0 %v739
    %767 = vmatprep.subr.mxu0 0.0
    %768 = vmatpush1.msra.mxu0 %v740
    %769 = vmatprep.subr.mxu0 0.0
    %770 = vmatpush1.msra.mxu0 %v741
    %771 = vmatprep.subr.mxu0 0.0
    %772 = vmatpush1.msra.mxu0 %v742
    %773 = vmatprep.subr.mxu0 0.0
    %774 = vmatpush1.msra.mxu0 %v743
    %775 = vmatprep.subr.mxu0 0.0
    %776 = vmatpush1.msra.mxu0 %v744
    %777 = vmatprep.subr.mxu0 0.0
    %778 = vmatpush1.msra.mxu0 0.0
    %779 = vmatprep.subr.mxu0 0.0
    %780 = vmatpush1.msra.mxu0 0.0
    %781 = vmatprep.subr.mxu0 0.0
    %782 = vmatpush1.msra.mxu0 0.0
    %783 = vmatprep.subr.mxu0 0.0
    %784 = vmatpush1.msra.mxu0 0.0
    %785 = vmatprep.subr.mxu0 0.0
    %786 = vmatpush1.msra.mxu0 0.0
    %787 = vmatprep.subr.mxu0 0.0
    %788 = vmatpush1.msra.mxu0 0.0
    %789 = vmatprep.subr.mxu0 0.0
    %790 = vmatpush1.msra.mxu0 0.0
    %791 = vmatprep.subr.mxu0 0.0
    %792 = vmatpush1.msra.mxu0 0.0
    %793 = vmatprep.subr.mxu0 0.0
    %794 = vmatpush1.msra.mxu0 0.0
    %795 = vmatprep.subr.mxu0 0.0
    %796 = vmatpush1.msra.mxu0 0.0
    %797 = vmatprep.subr.mxu0 0.0
    %798 = vmatpush1.msra.mxu0 0.0
    %799 = vmatprep.subr.mxu0 0.0
    %800 = vmatpush1.msra.mxu0 0.0
    %801 = vmatprep.subr.mxu0 0.0
    %802 = vmatpush1.msra.mxu0 0.0
    %803 = vmatprep.subr.mxu0 0.0
    %804 = vmatpush1.msra.mxu0 0.0
    %805 = vmatprep.subr.mxu0 0.0
    %806 = vmatpush1.msra.mxu0 0.0
    %807 = vmatprep.subr.mxu0 0.0
    %808 = vmatpush1.msra.mxu0 0.0
    %809 = vmatprep.mubr.f32.mxu0 0.0
    %810 = vmatmul.mubr.f32.gmra.mrb[0].mxu0 %v538
    %v811 = vpop.f32.mrb[0].mxu0
    %v812 = vadd.f32 0.0, %v811
    %v813 = vpop.f32.mrb[0].mxu0
    %814 = vmatprep.mubr.f32.mxu0 0.0
    %815 = vmatmul.mubr.f32.gmra.mrb[0].mxu0 %v543
    %v816 = vpop.f32.mrb[0].mxu0
    %v817 = vadd.f32 0.0, %v816
    %v818 = vpop.f32.mrb[0].mxu0
    %819 = vmatprep.mubr.f32.mxu0 0.0
    %820 = vmatmul.mubr.f32.gmra.mrb[0].mxu0 %v548
    %v821 = vpop.f32.mrb[0].mxu0
    %v822 = vadd.f32 0.0, %v821
    %v823 = vpop.f32.mrb[0].mxu0
    %824 = vmatprep.mubr.f32.mxu0 0.0
    %825 = vmatmul.mubr.f32.gmra.mrb[0].mxu0 %v553
    %v826 = vpop.f32.mrb[0].mxu0
    %v827 = vadd.f32 0.0, %v826
    %v828 = vpop.f32.mrb[0].mxu0
    %829 = vmatprep.mubr.f32.mxu0 0.0
    %830 = vmatmul.mubr.f32.gmra.mrb[0].mxu0 %v558
    %v831 = vpop.f32.mrb[0].mxu0
    %v832 = vadd.f32 0.0, %v831
    %v833 = vpop.f32.mrb[0].mxu0
    %834 = vmatprep.mubr.f32.mxu0 0.0
    %835 = vmatmul.mubr.f32.gmra.mrb[0].mxu0 %v563
    %v836 = vpop.f32.mrb[0].mxu0
    %v837 = vadd.f32 0.0, %v836
    %v838 = vpop.f32.mrb[0].mxu0
    %839 = vmatprep.mubr.f32.mxu0 0.0
    %840 = vmatmul.mubr.f32.gmra.mrb[0].mxu0 %v568
    %v841 = vpop.f32.mrb[0].mxu0
    %v842 = vadd.f32 0.0, %v841
    %v843 = vpop.f32.mrb[0].mxu0
    %844 = vmatprep.mubr.f32.mxu0 0.0
    %845 = vmatmul.mubr.f32.gmra.mrb[0].mxu0 %v573
    %v846 = vpop.f32.mrb[0].mxu0
    %v847 = vadd.f32 0.0, %v846
    %v848 = vpop.f32.mrb[0].mxu0
    %849 = vmatprep.mubr.f32.mxu0 0.0
    %850 = vmatmul.mubr.f32.gmra.mrb[0].mxu0 %v578
    %v851 = vpop.f32.mrb[0].mxu0
    %v852 = vadd.f32 0.0, %v851
    %v853 = vpop.f32.mrb[0].mxu0
    %854 = vmatprep.mubr.f32.mxu0 0.0
    %855 = vmatmul.mubr.f32.gmra.mrb[0].mxu0 %v583
    %v856 = vpop.f32.mrb[0].mxu0
    %v857 = vadd.f32 0.0, %v856
    %v858 = vpop.f32.mrb[0].mxu0
    %859 = vmatprep.mubr.f32.mxu0 0.0
    %860 = vmatmul.mubr.f32.gmra.mrb[0].mxu0 %v588
    %v861 = vpop.f32.mrb[0].mxu0
    %v862 = vadd.f32 0.0, %v861
    %v863 = vpop.f32.mrb[0].mxu0
    %864 = vmatprep.mubr.f32.mxu0 0.0
    %865 = vmatmul.mubr.f32.gmra.mrb[0].mxu0 %v593
    %v866 = vpop.f32.mrb[0].mxu0
    %v867 = vadd.f32 0.0, %v866
    %v868 = vpop.f32.mrb[0].mxu0
    %869 = vmatprep.mubr.f32.mxu0 0.0
    %870 = vmatmul.mubr.f32.gmra.mrb[0].mxu0 %v598
    %v871 = vpop.f32.mrb[0].mxu0
    %v872 = vadd.f32 0.0, %v871
    %v873 = vpop.f32.mrb[0].mxu0
    %874 = vmatprep.mubr.f32.mxu0 0.0
    %875 = vmatmul.mubr.f32.gmra.mrb[0].mxu0 %v603
    %v876 = vpop.f32.mrb[0].mxu0
    %v877 = vadd.f32 0.0, %v876
    %v878 = vpop.f32.mrb[0].mxu0
    %879 = vmatprep.mubr.f32.mxu0 0.0
    %880 = vmatmul.mubr.f32.gmra.mrb[0].mxu0 %v608
    %v881 = vpop.f32.mrb[0].mxu0
    %v882 = vadd.f32 0.0, %v881
    %v883 = vpop.f32.mrb[0].mxu0
    %884 = vmatprep.mubr.f32.mxu0 0.0
    %885 = vmatmul.mubr.f32.gmra.mrb[0].mxu0 %v613
    %v886 = vpop.f32.mrb[0].mxu0
    %v887 = vadd.f32 0.0, %v886
    %v888 = vpop.f32.mrb[0].mxu0
    %889 = vmatprep.mubr.f32.mxu0 0.0
    %890 = vmatmul.mubr.f32.gmra.mrb[0].mxu0 %v618
    %v891 = vpop.f32.mrb[0].mxu0
    %v892 = vadd.f32 0.0, %v891
    %v893 = vpop.f32.mrb[0].mxu0
    %894 = vmatprep.mubr.f32.mxu0 0.0
    %895 = vmatmul.mubr.f32.gmra.mrb[0].mxu0 %v623
    %v896 = vpop.f32.mrb[0].mxu0
    %v897 = vadd.f32 0.0, %v896
    %v898 = vpop.f32.mrb[0].mxu0
    %899 = vmatprep.mubr.f32.mxu0 0.0
    %900 = vmatmul.mubr.f32.gmra.mrb[0].mxu0 %v628
    %v901 = vpop.f32.mrb[0].mxu0
    %v902 = vadd.f32 0.0, %v901
    %v903 = vpop.f32.mrb[0].mxu0
    %904 = vmatprep.mubr.f32.mxu0 0.0
    %905 = vmatmul.mubr.f32.gmra.mrb[0].mxu0 %v633
    %v906 = vpop.f32.mrb[0].mxu0
    %v907 = vadd.f32 0.0, %v906
    %v908 = vpop.f32.mrb[0].mxu0
    %909 = vmatprep.mubr.f32.mxu0 0.0
    %910 = vmatmul.mubr.f32.gmra.mrb[0].mxu0 %v638
    %v911 = vpop.f32.mrb[0].mxu0
    %v912 = vadd.f32 0.0, %v911
    %v913 = vpop.f32.mrb[0].mxu0
    %914 = vmatprep.mubr.f32.mxu0 0.0
    %915 = vmatmul.mubr.f32.gmra.mrb[0].mxu0 %v643
    %v916 = vpop.f32.mrb[0].mxu0
    %v917 = vadd.f32 0.0, %v916
    %v918 = vpop.f32.mrb[0].mxu0
    %919 = vmatprep.mubr.f32.mxu0 0.0
    %920 = vmatmul.mubr.f32.gmra.mrb[0].mxu0 %v648
    %v921 = vpop.f32.mrb[0].mxu0
    %v922 = vadd.f32 0.0, %v921
    %v923 = vpop.f32.mrb[0].mxu0
    %924 = vmatprep.mubr.f32.mxu0 0.0
    %925 = vmatmul.mubr.f32.gmra.mrb[0].mxu0 %v653
    %v926 = vpop.f32.mrb[0].mxu0
    %v927 = vadd.f32 0.0, %v926
    %v928 = vpop.f32.mrb[0].mxu0
    %929 = vmatprep.mubr.f32.mxu0 0.0
    %930 = vmatmul.mubr.f32.gmra.mrb[0].mxu0 %v658
    %v931 = vpop.f32.mrb[0].mxu0
    %v932 = vadd.f32 0.0, %v931
    %v933 = vpop.f32.mrb[0].mxu0
    %934 = vmatprep.mubr.f32.mxu0 0.0
    %935 = vmatmul.mubr.f32.gmra.mrb[0].mxu0 %v663
    %v936 = vpop.f32.mrb[0].mxu0
    %v937 = vadd.f32 0.0, %v936
    %v938 = vpop.f32.mrb[0].mxu0
    %939 = vmatprep.mubr.f32.mxu0 0.0
    %940 = vmatmul.mubr.f32.gmra.mrb[0].mxu0 %v668
    %v941 = vpop.f32.mrb[0].mxu0
    %v942 = vadd.f32 0.0, %v941
    %v943 = vpop.f32.mrb[0].mxu0
    %944 = vmatprep.mubr.f32.mxu0 0.0
    %945 = vmatmul.mubr.f32.gmra.mrb[0].mxu0 %v673
    %v946 = vpop.f32.mrb[0].mxu0
    %v947 = vadd.f32 0.0, %v946
    %v948 = vpop.f32.mrb[0].mxu0
    %949 = vmatprep.mubr.f32.mxu0 0.0
    %950 = vmatmul.mubr.f32.gmra.mrb[0].mxu0 %v678
    %v951 = vpop.f32.mrb[0].mxu0
    %v952 = vadd.f32 0.0, %v951
    %v953 = vpop.f32.mrb[0].mxu0
    %954 = vmatprep.mubr.f32.mxu0 0.0
    %955 = vmatmul.mubr.f32.gmra.mrb[0].mxu0 %v683
    %v956 = vpop.f32.mrb[0].mxu0
    %v957 = vadd.f32 0.0, %v956
    %v958 = vpop.f32.mrb[0].mxu0
    %959 = vmatprep.mubr.f32.mxu0 0.0
    %960 = vmatmul.mubr.f32.gmra.mrb[0].mxu0 %v688
    %v961 = vpop.f32.mrb[0].mxu0
    %v962 = vadd.f32 0.0, %v961
    %v963 = vpop.f32.mrb[0].mxu0
    %964 = vmatprep.mubr.f32.mxu0 0.0
    %965 = vmatmul.mubr.f32.gmra.mrb[0].mxu0 %v693
    %v966 = vpop.f32.mrb[0].mxu0
    %v967 = vadd.f32 0.0, %v966
    %v968 = vpop.f32.mrb[0].mxu0
    %969 = vdwg.mxu0
    %v970 = vadd.f32 %v696, %v812
    %v971 = vadd.f32 %v697, %v817
    %v972 = vadd.f32 %v698, %v822
    %v973 = vadd.f32 %v699, %v827
    %v974 = vadd.f32 %v700, %v832
    %v975 = vadd.f32 %v701, %v837
    %v976 = vadd.f32 %v702, %v842
    %v977 = vadd.f32 %v703, %v847
    %v978 = vadd.f32 %v704, %v852
    %v979 = vadd.f32 %v705, %v857
    %v980 = vadd.f32 %v706, %v862
    %v981 = vadd.f32 %v707, %v867
    %v982 = vadd.f32 %v708, %v872
    %v983 = vadd.f32 %v709, %v877
    %v984 = vadd.f32 %v710, %v882
    %v985 = vadd.f32 %v711, %v887
    %v986 = vadd.f32 %v712, %v892
    %v987 = vadd.f32 %v713, %v897
    %v988 = vadd.f32 %v714, %v902
    %v989 = vadd.f32 %v715, %v907
    %v990 = vadd.f32 %v716, %v912
    %v991 = vadd.f32 %v717, %v917
    %v992 = vadd.f32 %v718, %v922
    %v993 = vadd.f32 %v719, %v927
    %v994 = vadd.f32 %v720, %v932
    %v995 = vadd.f32 %v721, %v937
    %v996 = vadd.f32 %v722, %v942
    %v997 = vadd.f32 %v723, %v947
    %v998 = vadd.f32 %v724, %v952
    %v999 = vadd.f32 %v725, %v957
    %v1000 = vadd.f32 %v726, %v962
    %v1001 = vadd.f32 %v727, %v967
    %1002 = vst [vmem:[%s4] sm:$0xff] %v970
    %1003 = vst [vmem:[%s4 + $0x8] sm:$0xff] %v971
    %1004 = vst [vmem:[%s4 + $0x10] sm:$0xff] %v972
    %1005 = vst [vmem:[%s4 + $0x18] sm:$0xff] %v973
    %1006 = vst [vmem:[%s4 + $0x20] sm:$0xff] %v974
    %1007 = vst [vmem:[%s4 + $0x28] sm:$0xff] %v975
    %1008 = vst [vmem:[%s4 + $0x30] sm:$0xff] %v976
    %1009 = vst [vmem:[%s4 + $0x38] sm:$0xff] %v977
    %1010 = vst [vmem:[%s4 + $0x40] sm:$0xff] %v978
    %1011 = vst [vmem:[%s4 + $0x48] sm:$0xff] %v979
    %1012 = vst [vmem:[%s4 + $0x50] sm:$0xff] %v980
    %1013 = vst [vmem:[%s4 + $0x58] sm:$0xff] %v981
    %1014 = vst [vmem:[%s4 + $0x60] sm:$0xff] %v982
    %1015 = vst [vmem:[%s4 + $0x68] sm:$0xff] %v983
    %1016 = vst [vmem:[%s4 + $0x70] sm:$0xff] %v984
    %1017 = vst [vmem:[%s4 + $0x78] sm:$0xff] %v985
    %1018 = vst [vmem:[%s4 + $0x80] sm:$0xff] %v986
    %1019 = vst [vmem:[%s4 + $0x88] sm:$0xff] %v987
    %1020 = vst [vmem:[%s4 + $0x90] sm:$0xff] %v988
    %1021 = vst [vmem:[%s4 + $0x98] sm:$0xff] %v989
    %1022 = vst [vmem:[%s4 + $0xa0] sm:$0xff] %v990
    %1023 = vst [vmem:[%s4 + $0xa8] sm:$0xff] %v991
    %1024 = vst [vmem:[%s4 + $0xb0] sm:$0xff] %v992
    %1025 = vst [vmem:[%s4 + $0xb8] sm:$0xff] %v993
    %1026 = vst [vmem:[%s4 + $0xc0] sm:$0xff] %v994
    %1027 = vst [vmem:[%s4 + $0xc8] sm:$0xff] %v995
    %1028 = vst [vmem:[%s4 + $0xd0] sm:$0xff] %v996
    %1029 = vst [vmem:[%s4 + $0xd8] sm:$0xff] %v997
    %1030 = vst [vmem:[%s4 + $0xe0] sm:$0xff] %v998
    %1031 = vst [vmem:[%s4 + $0xe8] sm:$0xff] %v999
    %1032 = vst [vmem:[%s4 + $0xf0] sm:$0xff] %v1000
    %1033 = vst [vmem:[%s4 + $0xf8] sm:$0xff] %v1001
    %v1034 = vld [vmem:[%s0] sm:$0xff]
    %v1035 = vld [vmem:[%s0 + $0x8] sm:$0xff]
    %v1036 = vld [vmem:[%s0 + $0x10] sm:$0xff]
    %v1037 = vld [vmem:[%s0 + $0x18] sm:$0xff]
    %v1038 = vld [vmem:[%s0 + $0x20] sm:$0xff]
    %v1039 = vld [vmem:[%s0 + $0x28] sm:$0xff]
    %v1040 = vld [vmem:[%s0 + $0x30] sm:$0xff]
    %v1041 = vld [vmem:[%s0 + $0x38] sm:$0xff]
    %v1042 = vld [vmem:[%s0 + $0x40] sm:$0xff]
    %v1043 = vld [vmem:[%s0 + $0x48] sm:$0xff]
    %v1044 = vld [vmem:[%s0 + $0x50] sm:$0xff]
    %v1045 = vld [vmem:[%s0 + $0x58] sm:$0xff]
    %v1046 = vld [vmem:[%s0 + $0x60] sm:$0xff]
    %v1047 = vld [vmem:[%s0 + $0x68] sm:$0xff]
    %v1048 = vld [vmem:[%s0 + $0x70] sm:$0xff]
    %v1049 = vld [vmem:[%s0 + $0x78] sm:$0xff]
    %v1050 = vld [vmem:[%s0 + $0x80] sm:$0xff]
    %v1051 = vld [vmem:[%s0 + $0x88] sm:$0xff]
    %v1052 = vld [vmem:[%s0 + $0x90] sm:$0xff]
    %v1053 = vld [vmem:[%s0 + $0x98] sm:$0xff]
    %v1054 = vld [vmem:[%s0 + $0xa0] sm:$0xff]
    %v1055 = vld [vmem:[%s0 + $0xa8] sm:$0xff]
    %v1056 = vld [vmem:[%s0 + $0xb0] sm:$0xff]
    %v1057 = vld [vmem:[%s0 + $0xb8] sm:$0xff]
    %v1058 = vld [vmem:[%s0 + $0xc0] sm:$0xff]
    %v1059 = vld [vmem:[%s0 + $0xc8] sm:$0xff]
    %v1060 = vld [vmem:[%s0 + $0xd0] sm:$0xff]
    %v1061 = vld [vmem:[%s0 + $0xd8] sm:$0xff]
    %v1062 = vld [vmem:[%s0 + $0xe0] sm:$0xff]
    %v1063 = vld [vmem:[%s0 + $0xe8] sm:$0xff]
    %v1064 = vld [vmem:[%s0 + $0xf0] sm:$0xff]
    %v1065 = vld [vmem:[%s0 + $0xf8] sm:$0xff]
    %v1066 = vld [vmem:[%s0 + $0x100] sm:$0xff]
    %v1067 = vld [vmem:[%s0 + $0x108] sm:$0xff]
    %v1068 = vld [vmem:[%s0 + $0x110] sm:$0xff]
    %v1069 = vld [vmem:[%s0 + $0x118] sm:$0xff]
    %v1070 = vld [vmem:[%s0 + $0x120] sm:$0xff]
    %v1071 = vld [vmem:[%s0 + $0x128] sm:$0xff]
    %v1072 = vld [vmem:[%s0 + $0x130] sm:$0xff]
    %v1073 = vld [vmem:[%s0 + $0x138] sm:$0xff]
    %v1074 = vld [vmem:[%s0 + $0x140] sm:$0xff]
    %v1075 = vld [vmem:[%s0 + $0x148] sm:$0xff]
    %v1076 = vld [vmem:[%s0 + $0x150] sm:$0xff]
    %v1077 = vld [vmem:[%s0 + $0x158] sm:$0xff]
    %v1078 = vld [vmem:[%s0 + $0x160] sm:$0xff]
    %v1079 = vld [vmem:[%s0 + $0x168] sm:$0xff]
    %v1080 = vld [vmem:[%s0 + $0x170] sm:$0xff]
    %v1081 = vld [vmem:[%s0 + $0x178] sm:$0xff]
    %v1082 = vld [vmem:[%s0 + $0x180] sm:$0xff]
    %v1083 = vld [vmem:[%s0 + $0x188] sm:$0xff]
    %v1084 = vld [vmem:[%s0 + $0x190] sm:$0xff]
    %v1085 = vld [vmem:[%s0 + $0x198] sm:$0xff]
    %v1086 = vld [vmem:[%s0 + $0x1a0] sm:$0xff]
    %v1087 = vld [vmem:[%s0 + $0x1a8] sm:$0xff]
    %v1088 = vld [vmem:[%s0 + $0x1b0] sm:$0xff]
    %v1089 = vld [vmem:[%s0 + $0x1b8] sm:$0xff]
    %v1090 = vld [vmem:[%s0 + $0x1c0] sm:$0xff]
    %v1091 = vld [vmem:[%s0 + $0x1c8] sm:$0xff]
    %v1092 = vld [vmem:[%s0 + $0x1d0] sm:$0xff]
    %v1093 = vld [vmem:[%s0 + $0x1d8] sm:$0xff]
    %v1094 = vld [vmem:[%s0 + $0x1e0] sm:$0xff]
    %v1095 = vld [vmem:[%s0 + $0x1e8] sm:$0xff]
    %v1096 = vld [vmem:[%s0 + $0x1f0] sm:$0xff]
    %v1097 = vld [vmem:[%s0 + $0x1f8] sm:$0xff]
    %1098 = vmatprep.subr.mxu0 0.0
    %1099 = vmatpush1.msra.mxu0 %v538
    %1100 = vmatprep.subr.mxu0 0.0
    %1101 = vmatpush1.msra.mxu0 %v543
    %1102 = vmatprep.subr.mxu0 0.0
    %1103 = vmatpush1.msra.mxu0 %v548
    %1104 = vmatprep.subr.mxu0 0.0
    %1105 = vmatpush1.msra.mxu0 %v553
    %1106 = vmatprep.subr.mxu0 0.0
    %1107 = vmatpush1.msra.mxu0 %v558
    %1108 = vmatprep.subr.mxu0 0.0
    %1109 = vmatpush1.msra.mxu0 %v563
    %1110 = vmatprep.subr.mxu0 0.0
    %1111 = vmatpush1.msra.mxu0 %v568
    %1112 = vmatprep.subr.mxu0 0.0
    %1113 = vmatpush1.msra.mxu0 %v573
    %1114 = vmatprep.subr.mxu0 0.0
    %1115 = vmatpush1.msra.mxu0 %v578
    %1116 = vmatprep.subr.mxu0 0.0
    %1117 = vmatpush1.msra.mxu0 %v583
    %1118 = vmatprep.subr.mxu0 0.0
    %1119 = vmatpush1.msra.mxu0 %v588
    %1120 = vmatprep.subr.mxu0 0.0
    %1121 = vmatpush1.msra.mxu0 %v593
    %1122 = vmatprep.subr.mxu0 0.0
    %1123 = vmatpush1.msra.mxu0 %v598
    %1124 = vmatprep.subr.mxu0 0.0
    %1125 = vmatpush1.msra.mxu0 %v603
    %1126 = vmatprep.subr.mxu0 0.0
    %1127 = vmatpush1.msra.mxu0 %v608
    %1128 = vmatprep.subr.mxu0 0.0
    %1129 = vmatpush1.msra.mxu0 %v613
    %1130 = vmatprep.subr.mxu0 0.0
    %1131 = vmatpush1.msra.mxu0 %v618
    %1132 = vmatprep.subr.mxu0 0.0
    %1133 = vmatpush1.msra.mxu0 %v623
    %1134 = vmatprep.subr.mxu0 0.0
    %1135 = vmatpush1.msra.mxu0 %v628
    %1136 = vmatprep.subr.mxu0 0.0
    %1137 = vmatpush1.msra.mxu0 %v633
    %1138 = vmatprep.subr.mxu0 0.0
    %1139 = vmatpush1.msra.mxu0 %v638
    %1140 = vmatprep.subr.mxu0 0.0
    %1141 = vmatpush1.msra.mxu0 %v643
    %1142 = vmatprep.subr.mxu0 0.0
    %1143 = vmatpush1.msra.mxu0 %v648
    %1144 = vmatprep.subr.mxu0 0.0
    %1145 = vmatpush1.msra.mxu0 %v653
    %1146 = vmatprep.subr.mxu0 0.0
    %1147 = vmatpush1.msra.mxu0 %v658
    %1148 = vmatprep.subr.mxu0 0.0
    %1149 = vmatpush1.msra.mxu0 %v663
    %1150 = vmatprep.subr.mxu0 0.0
    %1151 = vmatpush1.msra.mxu0 %v668
    %1152 = vmatprep.subr.mxu0 0.0
    %1153 = vmatpush1.msra.mxu0 %v673
    %1154 = vmatprep.subr.mxu0 0.0
    %1155 = vmatpush1.msra.mxu0 %v678
    %1156 = vmatprep.subr.mxu0 0.0
    %1157 = vmatpush1.msra.mxu0 %v683
    %1158 = vmatprep.subr.mxu0 0.0
    %1159 = vmatpush1.msra.mxu0 %v688
    %1160 = vmatprep.subr.mxu0 0.0
    %1161 = vmatpush1.msra.mxu0 %v693
    %1162 = vmatprep.mubr.f32.mxu0 %v1035
    %1163 = vmatmul.mubr.f32.gmra.mrb[0].mxu0 %v1034
    %v1164 = vpop.f32.mrb[0].mxu0
    %v1165 = vadd.f32 0.0, %v1164
    %v1166 = vpop.f32.mrb[0].mxu0
    %1167 = vmatprep.mubr.f32.mxu0 %v1037
    %1168 = vmatmul.mubr.f32.gmra.mrb[0].mxu0 %v1036
    %v1169 = vpop.f32.mrb[0].mxu0
    %v1170 = vadd.f32 0.0, %v1169
    %v1171 = vpop.f32.mrb[0].mxu0
    %1172 = vmatprep.mubr.f32.mxu0 %v1039
    %1173 = vmatmul.mubr.f32.gmra.mrb[0].mxu0 %v1038
    %v1174 = vpop.f32.mrb[0].mxu0
    %v1175 = vadd.f32 0.0, %v1174
    %v1176 = vpop.f32.mrb[0].mxu0
    %1177 = vmatprep.mubr.f32.mxu0 %v1041
    %1178 = vmatmul.mubr.f32.gmra.mrb[0].mxu0 %v1040
    %v1179 = vpop.f32.mrb[0].mxu0
    %v1180 = vadd.f32 0.0, %v1179
    %v1181 = vpop.f32.mrb[0].mxu0
    %1182 = vmatprep.mubr.f32.mxu0 %v1043
    %1183 = vmatmul.mubr.f32.gmra.mrb[0].mxu0 %v1042
    %v1184 = vpop.f32.mrb[0].mxu0
    %v1185 = vadd.f32 0.0, %v1184
    %v1186 = vpop.f32.mrb[0].mxu0
    %1187 = vmatprep.mubr.f32.mxu0 %v1045
    %1188 = vmatmul.mubr.f32.gmra.mrb[0].mxu0 %v1044
    %v1189 = vpop.f32.mrb[0].mxu0
    %v1190 = vadd.f32 0.0, %v1189
    %v1191 = vpop.f32.mrb[0].mxu0
    %1192 = vmatprep.mubr.f32.mxu0 %v1047
    %1193 = vmatmul.mubr.f32.gmra.mrb[0].mxu0 %v1046
    %v1194 = vpop.f32.mrb[0].mxu0
    %v1195 = vadd.f32 0.0, %v1194
    %v1196 = vpop.f32.mrb[0].mxu0
    %1197 = vmatprep.mubr.f32.mxu0 %v1049
    %1198 = vmatmul.mubr.f32.gmra.mrb[0].mxu0 %v1048
    %v1199 = vpop.f32.mrb[0].mxu0
    %v1200 = vadd.f32 0.0, %v1199
    %v1201 = vpop.f32.mrb[0].mxu0
    %1202 = vmatprep.mubr.f32.mxu0 %v1051
    %1203 = vmatmul.mubr.f32.gmra.mrb[0].mxu0 %v1050
    %v1204 = vpop.f32.mrb[0].mxu0
    %v1205 = vadd.f32 0.0, %v1204
    %v1206 = vpop.f32.mrb[0].mxu0
    %1207 = vmatprep.mubr.f32.mxu0 %v1053
    %1208 = vmatmul.mubr.f32.gmra.mrb[0].mxu0 %v1052
    %v1209 = vpop.f32.mrb[0].mxu0
    %v1210 = vadd.f32 0.0, %v1209
    %v1211 = vpop.f32.mrb[0].mxu0
    %1212 = vmatprep.mubr.f32.mxu0 %v1055
    %1213 = vmatmul.mubr.f32.gmra.mrb[0].mxu0 %v1054
    %v1214 = vpop.f32.mrb[0].mxu0
    %v1215 = vadd.f32 0.0, %v1214
    %v1216 = vpop.f32.mrb[0].mxu0
    %1217 = vmatprep.mubr.f32.mxu0 %v1057
    %1218 = vmatmul.mubr.f32.gmra.mrb[0].mxu0 %v1056
    %v1219 = vpop.f32.mrb[0].mxu0
    %v1220 = vadd.f32 0.0, %v1219
    %v1221 = vpop.f32.mrb[0].mxu0
    %1222 = vmatprep.mubr.f32.mxu0 %v1059
    %1223 = vmatmul.mubr.f32.gmra.mrb[0].mxu0 %v1058
    %v1224 = vpop.f32.mrb[0].mxu0
    %v1225 = vadd.f32 0.0, %v1224
    %v1226 = vpop.f32.mrb[0].mxu0
    %1227 = vmatprep.mubr.f32.mxu0 %v1061
    %1228 = vmatmul.mubr.f32.gmra.mrb[0].mxu0 %v1060
    %v1229 = vpop.f32.mrb[0].mxu0
    %v1230 = vadd.f32 0.0, %v1229
    %v1231 = vpop.f32.mrb[0].mxu0
    %1232 = vmatprep.mubr.f32.mxu0 %v1063
    %1233 = vmatmul.mubr.f32.gmra.mrb[0].mxu0 %v1062
    %v1234 = vpop.f32.mrb[0].mxu0
    %v1235 = vadd.f32 0.0, %v1234
    %v1236 = vpop.f32.mrb[0].mxu0
    %1237 = vmatprep.mubr.f32.mxu0 %v1065
    %1238 = vmatmul.mubr.f32.gmra.mrb[0].mxu0 %v1064
    %v1239 = vpop.f32.mrb[0].mxu0
    %v1240 = vadd.f32 0.0, %v1239
    %v1241 = vpop.f32.mrb[0].mxu0
    %1242 = vmatprep.mubr.f32.mxu0 %v1067
    %1243 = vmatmul.mubr.f32.gmra.mrb[0].mxu0 %v1066
    %v1244 = vpop.f32.mrb[0].mxu0
    %v1245 = vadd.f32 0.0, %v1244
    %v1246 = vpop.f32.mrb[0].mxu0
    %1247 = vmatprep.mubr.f32.mxu0 %v1069
    %1248 = vmatmul.mubr.f32.gmra.mrb[0].mxu0 %v1068
    %v1249 = vpop.f32.mrb[0].mxu0
    %v1250 = vadd.f32 0.0, %v1249
    %v1251 = vpop.f32.mrb[0].mxu0
    %1252 = vmatprep.mubr.f32.mxu0 %v1071
    %1253 = vmatmul.mubr.f32.gmra.mrb[0].mxu0 %v1070
    %v1254 = vpop.f32.mrb[0].mxu0
    %v1255 = vadd.f32 0.0, %v1254
    %v1256 = vpop.f32.mrb[0].mxu0
    %1257 = vmatprep.mubr.f32.mxu0 %v1073
    %1258 = vmatmul.mubr.f32.gmra.mrb[0].mxu0 %v1072
    %v1259 = vpop.f32.mrb[0].mxu0
    %v1260 = vadd.f32 0.0, %v1259
    %v1261 = vpop.f32.mrb[0].mxu0
    %1262 = vmatprep.mubr.f32.mxu0 %v1075
    %1263 = vmatmul.mubr.f32.gmra.mrb[0].mxu0 %v1074
    %v1264 = vpop.f32.mrb[0].mxu0
    %v1265 = vadd.f32 0.0, %v1264
    %v1266 = vpop.f32.mrb[0].mxu0
    %1267 = vmatprep.mubr.f32.mxu0 %v1077
    %1268 = vmatmul.mubr.f32.gmra.mrb[0].mxu0 %v1076
    %v1269 = vpop.f32.mrb[0].mxu0
    %v1270 = vadd.f32 0.0, %v1269
    %v1271 = vpop.f32.mrb[0].mxu0
    %1272 = vmatprep.mubr.f32.mxu0 %v1079
    %1273 = vmatmul.mubr.f32.gmra.mrb[0].mxu0 %v1078
    %v1274 = vpop.f32.mrb[0].mxu0
    %v1275 = vadd.f32 0.0, %v1274
    %v1276 = vpop.f32.mrb[0].mxu0
    %1277 = vmatprep.mubr.f32.mxu0 %v1081
    %1278 = vmatmul.mubr.f32.gmra.mrb[0].mxu0 %v1080
    %v1279 = vpop.f32.mrb[0].mxu0
    %v1280 = vadd.f32 0.0, %v1279
    %v1281 = vpop.f32.mrb[0].mxu0
    %1282 = vmatprep.mubr.f32.mxu0 %v1083
    %1283 = vmatmul.mubr.f32.gmra.mrb[0].mxu0 %v1082
    %v1284 = vpop.f32.mrb[0].mxu0
    %v1285 = vadd.f32 0.0, %v1284
    %v1286 = vpop.f32.mrb[0].mxu0
    %1287 = vmatprep.mubr.f32.mxu0 %v1085
    %1288 = vmatmul.mubr.f32.gmra.mrb[0].mxu0 %v1084
    %v1289 = vpop.f32.mrb[0].mxu0
    %v1290 = vadd.f32 0.0, %v1289
    %v1291 = vpop.f32.mrb[0].mxu0
    %1292 = vmatprep.mubr.f32.mxu0 %v1087
    %1293 = vmatmul.mubr.f32.gmra.mrb[0].mxu0 %v1086
    %v1294 = vpop.f32.mrb[0].mxu0
    %v1295 = vadd.f32 0.0, %v1294
    %v1296 = vpop.f32.mrb[0].mxu0
    %1297 = vmatprep.mubr.f32.mxu0 %v1089
    %1298 = vmatmul.mubr.f32.gmra.mrb[0].mxu0 %v1088
    %v1299 = vpop.f32.mrb[0].mxu0
    %v1300 = vadd.f32 0.0, %v1299
    %v1301 = vpop.f32.mrb[0].mxu0
    %1302 = vmatprep.mubr.f32.mxu0 %v1091
    %1303 = vmatmul.mubr.f32.gmra.mrb[0].mxu0 %v1090
    %v1304 = vpop.f32.mrb[0].mxu0
    %v1305 = vadd.f32 0.0, %v1304
    %v1306 = vpop.f32.mrb[0].mxu0
    %1307 = vmatprep.mubr.f32.mxu0 %v1093
    %1308 = vmatmul.mubr.f32.gmra.mrb[0].mxu0 %v1092
    %v1309 = vpop.f32.mrb[0].mxu0
    %v1310 = vadd.f32 0.0, %v1309
    %v1311 = vpop.f32.mrb[0].mxu0
    %1312 = vmatprep.mubr.f32.mxu0 %v1095
    %1313 = vmatmul.mubr.f32.gmra.mrb[0].mxu0 %v1094
    %v1314 = vpop.f32.mrb[0].mxu0
    %v1315 = vadd.f32 0.0, %v1314
    %v1316 = vpop.f32.mrb[0].mxu0
    %1317 = vmatprep.mubr.f32.mxu0 %v1097
    %1318 = vmatmul.mubr.f32.gmra.mrb[0].mxu0 %v1096
    %v1319 = vpop.f32.mrb[0].mxu0
    %v1320 = vadd.f32 0.0, %v1319
    %v1321 = vpop.f32.mrb[0].mxu0
    %1322 = vdwg.mxu0
    %v1323 = vmul.f32 %v1165, 2.0
    %v1324 = vmul.f32 %v1170, 2.0
    %v1325 = vmul.f32 %v1175, 2.0
    %v1326 = vmul.f32 %v1180, 2.0
    %v1327 = vmul.f32 %v1185, 2.0
    %v1328 = vmul.f32 %v1190, 2.0
    %v1329 = vmul.f32 %v1195, 2.0
    %v1330 = vmul.f32 %v1200, 2.0
    %v1331 = vmul.f32 %v1205, 2.0
    %v1332 = vmul.f32 %v1210, 2.0
    %v1333 = vmul.f32 %v1215, 2.0
    %v1334 = vmul.f32 %v1220, 2.0
    %v1335 = vmul.f32 %v1225, 2.0
    %v1336 = vmul.f32 %v1230, 2.0
    %v1337 = vmul.f32 %v1235, 2.0
    %v1338 = vmul.f32 %v1240, 2.0
    %v1339 = vmul.f32 %v1245, 2.0
    %v1340 = vmul.f32 %v1250, 2.0
    %v1341 = vmul.f32 %v1255, 2.0
    %v1342 = vmul.f32 %v1260, 2.0
    %v1343 = vmul.f32 %v1265, 2.0
    %v1344 = vmul.f32 %v1270, 2.0
    %v1345 = vmul.f32 %v1275, 2.0
    %v1346 = vmul.f32 %v1280, 2.0
    %v1347 = vmul.f32 %v1285, 2.0
    %v1348 = vmul.f32 %v1290, 2.0
    %v1349 = vmul.f32 %v1295, 2.0
    %v1350 = vmul.f32 %v1300, 2.0
    %v1351 = vmul.f32 %v1305, 2.0
    %v1352 = vmul.f32 %v1310, 2.0
    %v1353 = vmul.f32 %v1315, 2.0
    %v1354 = vmul.f32 %v1320, 2.0
    %v1355 = vsub.f32 %v1323, %v375
    %v1356 = vsub.f32 %v1324, %v376
    %v1357 = vsub.f32 %v1325, %v377
    %v1358 = vsub.f32 %v1326, %v378
    %v1359 = vsub.f32 %v1327, %v379
    %v1360 = vsub.f32 %v1328, %v380
    %v1361 = vsub.f32 %v1329, %v381
    %v1362 = vsub.f32 %v1330, %v382
    %v1363 = vsub.f32 %v1331, %v383
    %v1364 = vsub.f32 %v1332, %v384
    %v1365 = vsub.f32 %v1333, %v385
    %v1366 = vsub.f32 %v1334, %v386
    %v1367 = vsub.f32 %v1335, %v387
    %v1368 = vsub.f32 %v1336, %v388
    %v1369 = vsub.f32 %v1337, %v389
    %v1370 = vsub.f32 %v1338, %v390
    %v1371 = vsub.f32 %v1339, %v391
    %v1372 = vsub.f32 %v1340, %v392
    %v1373 = vsub.f32 %v1341, %v393
    %v1374 = vsub.f32 %v1342, %v394
    %v1375 = vsub.f32 %v1343, %v395
    %v1376 = vsub.f32 %v1344, %v396
    %v1377 = vsub.f32 %v1345, %v397
    %v1378 = vsub.f32 %v1346, %v398
    %v1379 = vsub.f32 %v1347, %v399
    %v1380 = vsub.f32 %v1348, %v400
    %v1381 = vsub.f32 %v1349, %v401
    %v1382 = vsub.f32 %v1350, %v402
    %v1383 = vsub.f32 %v1351, %v403
    %v1384 = vsub.f32 %v1352, %v404
    %v1385 = vsub.f32 %v1353, %v405
    %v1386 = vsub.f32 %v1354, %v406
    %v1387 = vld [vmem:[%s4] sm:$0xff]
    %v1388 = vld [vmem:[%s4 + $0x8] sm:$0xff]
    %v1389 = vld [vmem:[%s4 + $0x10] sm:$0xff]
    %v1390 = vld [vmem:[%s4 + $0x18] sm:$0xff]
    %v1391 = vld [vmem:[%s4 + $0x20] sm:$0xff]
    %v1392 = vld [vmem:[%s4 + $0x28] sm:$0xff]
    %v1393 = vld [vmem:[%s4 + $0x30] sm:$0xff]
    %v1394 = vld [vmem:[%s4 + $0x38] sm:$0xff]
    %v1395 = vld [vmem:[%s4 + $0x40] sm:$0xff]
    %v1396 = vld [vmem:[%s4 + $0x48] sm:$0xff]
    %v1397 = vld [vmem:[%s4 + $0x50] sm:$0xff]
    %v1398 = vld [vmem:[%s4 + $0x58] sm:$0xff]
    %v1399 = vld [vmem:[%s4 + $0x60] sm:$0xff]
    %v1400 = vld [vmem:[%s4 + $0x68] sm:$0xff]
    %v1401 = vld [vmem:[%s4 + $0x70] sm:$0xff]
    %v1402 = vld [vmem:[%s4 + $0x78] sm:$0xff]
    %v1403 = vld [vmem:[%s4 + $0x80] sm:$0xff]
    %v1404 = vld [vmem:[%s4 + $0x88] sm:$0xff]
    %v1405 = vld [vmem:[%s4 + $0x90] sm:$0xff]
    %v1406 = vld [vmem:[%s4 + $0x98] sm:$0xff]
    %v1407 = vld [vmem:[%s4 + $0xa0] sm:$0xff]
    %v1408 = vld [vmem:[%s4 + $0xa8] sm:$0xff]
    %v1409 = vld [vmem:[%s4 + $0xb0] sm:$0xff]
    %v1410 = vld [vmem:[%s4 + $0xb8] sm:$0xff]
    %v1411 = vld [vmem:[%s4 + $0xc0] sm:$0xff]
    %v1412 = vld [vmem:[%s4 + $0xc8] sm:$0xff]
    %v1413 = vld [vmem:[%s4 + $0xd0] sm:$0xff]
    %v1414 = vld [vmem:[%s4 + $0xd8] sm:$0xff]
    %v1415 = vld [vmem:[%s4 + $0xe0] sm:$0xff]
    %v1416 = vld [vmem:[%s4 + $0xe8] sm:$0xff]
    %v1417 = vld [vmem:[%s4 + $0xf0] sm:$0xff]
    %v1418 = vld [vmem:[%s4 + $0xf8] sm:$0xff]
    %s1419 = scalar_lea.vmem [#allocation2], 256
    %v1420 = vld [vmem:[%s1419] sm:$0xff]
    %v1421 = vld [vmem:[%s1419 + $0x8] sm:$0xff]
    %v1422 = vld [vmem:[%s1419 + $0x10] sm:$0xff]
    %v1423 = vld [vmem:[%s1419 + $0x18] sm:$0xff]
    %v1424 = vld [vmem:[%s1419 + $0x20] sm:$0xff]
    %v1425 = vld [vmem:[%s1419 + $0x28] sm:$0xff]
    %v1426 = vld [vmem:[%s1419 + $0x30] sm:$0xff]
    %v1427 = vld [vmem:[%s1419 + $0x38] sm:$0xff]
    %v1428 = vld [vmem:[%s1419 + $0x40] sm:$0xff]
    %v1429 = vld [vmem:[%s1419 + $0x48] sm:$0xff]
    %v1430 = vld [vmem:[%s1419 + $0x50] sm:$0xff]
    %v1431 = vld [vmem:[%s1419 + $0x58] sm:$0xff]
    %v1432 = vld [vmem:[%s1419 + $0x60] sm:$0xff]
    %v1433 = vld [vmem:[%s1419 + $0x68] sm:$0xff]
    %v1434 = vld [vmem:[%s1419 + $0x70] sm:$0xff]
    %v1435 = vld [vmem:[%s1419 + $0x78] sm:$0xff]
    %1436 = vmatprep.subr.mxu0 0.0
    %1437 = vmatpush1.msra.mxu0 %v1420
    %1438 = vmatprep.subr.mxu0 0.0
    %1439 = vmatpush1.msra.mxu0 %v1421
    %1440 = vmatprep.subr.mxu0 0.0
    %1441 = vmatpush1.msra.mxu0 %v1422
    %1442 = vmatprep.subr.mxu0 0.0
    %1443 = vmatpush1.msra.mxu0 %v1423
    %1444 = vmatprep.subr.mxu0 0.0
    %1445 = vmatpush1.msra.mxu0 %v1424
    %1446 = vmatprep.subr.mxu0 0.0
    %1447 = vmatpush1.msra.mxu0 %v1425
    %1448 = vmatprep.subr.mxu0 0.0
    %1449 = vmatpush1.msra.mxu0 %v1426
    %1450 = vmatprep.subr.mxu0 0.0
    %1451 = vmatpush1.msra.mxu0 %v1427
    %1452 = vmatprep.subr.mxu0 0.0
    %1453 = vmatpush1.msra.mxu0 %v1428
    %1454 = vmatprep.subr.mxu0 0.0
    %1455 = vmatpush1.msra.mxu0 %v1429
    %1456 = vmatprep.subr.mxu0 0.0
    %1457 = vmatpush1.msra.mxu0 %v1430
    %1458 = vmatprep.subr.mxu0 0.0
    %1459 = vmatpush1.msra.mxu0 %v1431
    %1460 = vmatprep.subr.mxu0 0.0
    %1461 = vmatpush1.msra.mxu0 %v1432
    %1462 = vmatprep.subr.mxu0 0.0
    %1463 = vmatpush1.msra.mxu0 %v1433
    %1464 = vmatprep.subr.mxu0 0.0
    %1465 = vmatpush1.msra.mxu0 %v1434
    %1466 = vmatprep.subr.mxu0 0.0
    %1467 = vmatpush1.msra.mxu0 %v1435
    %1468 = vmatprep.subr.mxu0 0.0
    %1469 = vmatpush1.msra.mxu0 0.0
    %1470 = vmatprep.subr.mxu0 0.0
    %1471 = vmatpush1.msra.mxu0 0.0
    %1472 = vmatprep.subr.mxu0 0.0
    %1473 = vmatpush1.msra.mxu0 0.0
    %1474 = vmatprep.subr.mxu0 0.0
    %1475 = vmatpush1.msra.mxu0 0.0
    %1476 = vmatprep.subr.mxu0 0.0
    %1477 = vmatpush1.msra.mxu0 0.0
    %1478 = vmatprep.subr.mxu0 0.0
    %1479 = vmatpush1.msra.mxu0 0.0
    %1480 = vmatprep.subr.mxu0 0.0
    %1481 = vmatpush1.msra.mxu0 0.0
    %1482 = vmatprep.subr.mxu0 0.0
    %1483 = vmatpush1.msra.mxu0 0.0
    %1484 = vmatprep.subr.mxu0 0.0
    %1485 = vmatpush1.msra.mxu0 0.0
    %1486 = vmatprep.subr.mxu0 0.0
    %1487 = vmatpush1.msra.mxu0 0.0
    %1488 = vmatprep.subr.mxu0 0.0
    %1489 = vmatpush1.msra.mxu0 0.0
    %1490 = vmatprep.subr.mxu0 0.0
    %1491 = vmatpush1.msra.mxu0 0.0
    %1492 = vmatprep.subr.mxu0 0.0
    %1493 = vmatpush1.msra.mxu0 0.0
    %1494 = vmatprep.subr.mxu0 0.0
    %1495 = vmatpush1.msra.mxu0 0.0
    %1496 = vmatprep.subr.mxu0 0.0
    %1497 = vmatpush1.msra.mxu0 0.0
    %1498 = vmatprep.subr.mxu0 0.0
    %1499 = vmatpush1.msra.mxu0 0.0
    %1500 = vmatprep.mubr.f32.mxu0 0.0
    %1501 = vmatmul.mubr.f32.gmra.mrb[0].mxu0 %v1355
    %v1502 = vpop.f32.mrb[0].mxu0
    %v1503 = vadd.f32 0.0, %v1502
    %v1504 = vpop.f32.mrb[0].mxu0
    %1505 = vmatprep.mubr.f32.mxu0 0.0
    %1506 = vmatmul.mubr.f32.gmra.mrb[0].mxu0 %v1356
    %v1507 = vpop.f32.mrb[0].mxu0
    %v1508 = vadd.f32 0.0, %v1507
    %v1509 = vpop.f32.mrb[0].mxu0
    %1510 = vmatprep.mubr.f32.mxu0 0.0
    %1511 = vmatmul.mubr.f32.gmra.mrb[0].mxu0 %v1357
    %v1512 = vpop.f32.mrb[0].mxu0
    %v1513 = vadd.f32 0.0, %v1512
    %v1514 = vpop.f32.mrb[0].mxu0
    %1515 = vmatprep.mubr.f32.mxu0 0.0
    %1516 = vmatmul.mubr.f32.gmra.mrb[0].mxu0 %v1358
    %v1517 = vpop.f32.mrb[0].mxu0
    %v1518 = vadd.f32 0.0, %v1517
    %v1519 = vpop.f32.mrb[0].mxu0
    %1520 = vmatprep.mubr.f32.mxu0 0.0
    %1521 = vmatmul.mubr.f32.gmra.mrb[0].mxu0 %v1359
    %v1522 = vpop.f32.mrb[0].mxu0
    %v1523 = vadd.f32 0.0, %v1522
    %v1524 = vpop.f32.mrb[0].mxu0
    %1525 = vmatprep.mubr.f32.mxu0 0.0
    %1526 = vmatmul.mubr.f32.gmra.mrb[0].mxu0 %v1360
    %v1527 = vpop.f32.mrb[0].mxu0
    %v1528 = vadd.f32 0.0, %v1527
    %v1529 = vpop.f32.mrb[0].mxu0
    %1530 = vmatprep.mubr.f32.mxu0 0.0
    %1531 = vmatmul.mubr.f32.gmra.mrb[0].mxu0 %v1361
    %v1532 = vpop.f32.mrb[0].mxu0
    %v1533 = vadd.f32 0.0, %v1532
    %v1534 = vpop.f32.mrb[0].mxu0
    %1535 = vmatprep.mubr.f32.mxu0 0.0
    %1536 = vmatmul.mubr.f32.gmra.mrb[0].mxu0 %v1362
    %v1537 = vpop.f32.mrb[0].mxu0
    %v1538 = vadd.f32 0.0, %v1537
    %v1539 = vpop.f32.mrb[0].mxu0
    %1540 = vmatprep.mubr.f32.mxu0 0.0
    %1541 = vmatmul.mubr.f32.gmra.mrb[0].mxu0 %v1363
    %v1542 = vpop.f32.mrb[0].mxu0
    %v1543 = vadd.f32 0.0, %v1542
    %v1544 = vpop.f32.mrb[0].mxu0
    %1545 = vmatprep.mubr.f32.mxu0 0.0
    %1546 = vmatmul.mubr.f32.gmra.mrb[0].mxu0 %v1364
    %v1547 = vpop.f32.mrb[0].mxu0
    %v1548 = vadd.f32 0.0, %v1547
    %v1549 = vpop.f32.mrb[0].mxu0
    %1550 = vmatprep.mubr.f32.mxu0 0.0
    %1551 = vmatmul.mubr.f32.gmra.mrb[0].mxu0 %v1365
    %v1552 = vpop.f32.mrb[0].mxu0
    %v1553 = vadd.f32 0.0, %v1552
    %v1554 = vpop.f32.mrb[0].mxu0
    %1555 = vmatprep.mubr.f32.mxu0 0.0
    %1556 = vmatmul.mubr.f32.gmra.mrb[0].mxu0 %v1366
    %v1557 = vpop.f32.mrb[0].mxu0
    %v1558 = vadd.f32 0.0, %v1557
    %v1559 = vpop.f32.mrb[0].mxu0
    %1560 = vmatprep.mubr.f32.mxu0 0.0
    %1561 = vmatmul.mubr.f32.gmra.mrb[0].mxu0 %v1367
    %v1562 = vpop.f32.mrb[0].mxu0
    %v1563 = vadd.f32 0.0, %v1562
    %v1564 = vpop.f32.mrb[0].mxu0
    %1565 = vmatprep.mubr.f32.mxu0 0.0
    %1566 = vmatmul.mubr.f32.gmra.mrb[0].mxu0 %v1368
    %v1567 = vpop.f32.mrb[0].mxu0
    %v1568 = vadd.f32 0.0, %v1567
    %v1569 = vpop.f32.mrb[0].mxu0
    %1570 = vmatprep.mubr.f32.mxu0 0.0
    %1571 = vmatmul.mubr.f32.gmra.mrb[0].mxu0 %v1369
    %v1572 = vpop.f32.mrb[0].mxu0
    %v1573 = vadd.f32 0.0, %v1572
    %v1574 = vpop.f32.mrb[0].mxu0
    %1575 = vmatprep.mubr.f32.mxu0 0.0
    %1576 = vmatmul.mubr.f32.gmra.mrb[0].mxu0 %v1370
    %v1577 = vpop.f32.mrb[0].mxu0
    %v1578 = vadd.f32 0.0, %v1577
    %v1579 = vpop.f32.mrb[0].mxu0
    %1580 = vmatprep.mubr.f32.mxu0 0.0
    %1581 = vmatmul.mubr.f32.gmra.mrb[0].mxu0 %v1371
    %v1582 = vpop.f32.mrb[0].mxu0
    %v1583 = vadd.f32 0.0, %v1582
    %v1584 = vpop.f32.mrb[0].mxu0
    %1585 = vmatprep.mubr.f32.mxu0 0.0
    %1586 = vmatmul.mubr.f32.gmra.mrb[0].mxu0 %v1372
    %v1587 = vpop.f32.mrb[0].mxu0
    %v1588 = vadd.f32 0.0, %v1587
    %v1589 = vpop.f32.mrb[0].mxu0
    %1590 = vmatprep.mubr.f32.mxu0 0.0
    %1591 = vmatmul.mubr.f32.gmra.mrb[0].mxu0 %v1373
    %v1592 = vpop.f32.mrb[0].mxu0
    %v1593 = vadd.f32 0.0, %v1592
    %v1594 = vpop.f32.mrb[0].mxu0
    %1595 = vmatprep.mubr.f32.mxu0 0.0
    %1596 = vmatmul.mubr.f32.gmra.mrb[0].mxu0 %v1374
    %v1597 = vpop.f32.mrb[0].mxu0
    %v1598 = vadd.f32 0.0, %v1597
    %v1599 = vpop.f32.mrb[0].mxu0
    %1600 = vmatprep.mubr.f32.mxu0 0.0
    %1601 = vmatmul.mubr.f32.gmra.mrb[0].mxu0 %v1375
    %v1602 = vpop.f32.mrb[0].mxu0
    %v1603 = vadd.f32 0.0, %v1602
    %v1604 = vpop.f32.mrb[0].mxu0
    %1605 = vmatprep.mubr.f32.mxu0 0.0
    %1606 = vmatmul.mubr.f32.gmra.mrb[0].mxu0 %v1376
    %v1607 = vpop.f32.mrb[0].mxu0
    %v1608 = vadd.f32 0.0, %v1607
    %v1609 = vpop.f32.mrb[0].mxu0
    %1610 = vmatprep.mubr.f32.mxu0 0.0
    %1611 = vmatmul.mubr.f32.gmra.mrb[0].mxu0 %v1377
    %v1612 = vpop.f32.mrb[0].mxu0
    %v1613 = vadd.f32 0.0, %v1612
    %v1614 = vpop.f32.mrb[0].mxu0
    %1615 = vmatprep.mubr.f32.mxu0 0.0
    %1616 = vmatmul.mubr.f32.gmra.mrb[0].mxu0 %v1378
    %v1617 = vpop.f32.mrb[0].mxu0
    %v1618 = vadd.f32 0.0, %v1617
    %v1619 = vpop.f32.mrb[0].mxu0
    %1620 = vmatprep.mubr.f32.mxu0 0.0
    %1621 = vmatmul.mubr.f32.gmra.mrb[0].mxu0 %v1379
    %v1622 = vpop.f32.mrb[0].mxu0
    %v1623 = vadd.f32 0.0, %v1622
    %v1624 = vpop.f32.mrb[0].mxu0
    %1625 = vmatprep.mubr.f32.mxu0 0.0
    %1626 = vmatmul.mubr.f32.gmra.mrb[0].mxu0 %v1380
    %v1627 = vpop.f32.mrb[0].mxu0
    %v1628 = vadd.f32 0.0, %v1627
    %v1629 = vpop.f32.mrb[0].mxu0
    %1630 = vmatprep.mubr.f32.mxu0 0.0
    %1631 = vmatmul.mubr.f32.gmra.mrb[0].mxu0 %v1381
    %v1632 = vpop.f32.mrb[0].mxu0
    %v1633 = vadd.f32 0.0, %v1632
    %v1634 = vpop.f32.mrb[0].mxu0
    %1635 = vmatprep.mubr.f32.mxu0 0.0
    %1636 = vmatmul.mubr.f32.gmra.mrb[0].mxu0 %v1382
    %v1637 = vpop.f32.mrb[0].mxu0
    %v1638 = vadd.f32 0.0, %v1637
    %v1639 = vpop.f32.mrb[0].mxu0
    %1640 = vmatprep.mubr.f32.mxu0 0.0
    %1641 = vmatmul.mubr.f32.gmra.mrb[0].mxu0 %v1383
    %v1642 = vpop.f32.mrb[0].mxu0
    %v1643 = vadd.f32 0.0, %v1642
    %v1644 = vpop.f32.mrb[0].mxu0
    %1645 = vmatprep.mubr.f32.mxu0 0.0
    %1646 = vmatmul.mubr.f32.gmra.mrb[0].mxu0 %v1384
    %v1647 = vpop.f32.mrb[0].mxu0
    %v1648 = vadd.f32 0.0, %v1647
    %v1649 = vpop.f32.mrb[0].mxu0
    %1650 = vmatprep.mubr.f32.mxu0 0.0
    %1651 = vmatmul.mubr.f32.gmra.mrb[0].mxu0 %v1385
    %v1652 = vpop.f32.mrb[0].mxu0
    %v1653 = vadd.f32 0.0, %v1652
    %v1654 = vpop.f32.mrb[0].mxu0
    %1655 = vmatprep.mubr.f32.mxu0 0.0
    %1656 = vmatmul.mubr.f32.gmra.mrb[0].mxu0 %v1386
    %v1657 = vpop.f32.mrb[0].mxu0
    %v1658 = vadd.f32 0.0, %v1657
    %v1659 = vpop.f32.mrb[0].mxu0
    %1660 = vdwg.mxu0
    %v1661 = vadd.f32 %v1387, %v1503
    %v1662 = vadd.f32 %v1388, %v1508
    %v1663 = vadd.f32 %v1389, %v1513
    %v1664 = vadd.f32 %v1390, %v1518
    %v1665 = vadd.f32 %v1391, %v1523
    %v1666 = vadd.f32 %v1392, %v1528
    %v1667 = vadd.f32 %v1393, %v1533
    %v1668 = vadd.f32 %v1394, %v1538
    %v1669 = vadd.f32 %v1395, %v1543
    %v1670 = vadd.f32 %v1396, %v1548
    %v1671 = vadd.f32 %v1397, %v1553
    %v1672 = vadd.f32 %v1398, %v1558
    %v1673 = vadd.f32 %v1399, %v1563
    %v1674 = vadd.f32 %v1400, %v1568
    %v1675 = vadd.f32 %v1401, %v1573
    %v1676 = vadd.f32 %v1402, %v1578
    %v1677 = vadd.f32 %v1403, %v1583
    %v1678 = vadd.f32 %v1404, %v1588
    %v1679 = vadd.f32 %v1405, %v1593
    %v1680 = vadd.f32 %v1406, %v1598
    %v1681 = vadd.f32 %v1407, %v1603
    %v1682 = vadd.f32 %v1408, %v1608
    %v1683 = vadd.f32 %v1409, %v1613
    %v1684 = vadd.f32 %v1410, %v1618
    %v1685 = vadd.f32 %v1411, %v1623
    %v1686 = vadd.f32 %v1412, %v1628
    %v1687 = vadd.f32 %v1413, %v1633
    %v1688 = vadd.f32 %v1414, %v1638
    %v1689 = vadd.f32 %v1415, %v1643
    %v1690 = vadd.f32 %v1416, %v1648
    %v1691 = vadd.f32 %v1417, %v1653
    %v1692 = vadd.f32 %v1418, %v1658
    %1693 = vst [vmem:[%s4] sm:$0xff] %v1661
    %1694 = vst [vmem:[%s4 + $0x8] sm:$0xff] %v1662
    %1695 = vst [vmem:[%s4 + $0x10] sm:$0xff] %v1663
    %1696 = vst [vmem:[%s4 + $0x18] sm:$0xff] %v1664
    %1697 = vst [vmem:[%s4 + $0x20] sm:$0xff] %v1665
    %1698 = vst [vmem:[%s4 + $0x28] sm:$0xff] %v1666
    %1699 = vst [vmem:[%s4 + $0x30] sm:$0xff] %v1667
    %1700 = vst [vmem:[%s4 + $0x38] sm:$0xff] %v1668
    %1701 = vst [vmem:[%s4 + $0x40] sm:$0xff] %v1669
    %1702 = vst [vmem:[%s4 + $0x48] sm:$0xff] %v1670
    %1703 = vst [vmem:[%s4 + $0x50] sm:$0xff] %v1671
    %1704 = vst [vmem:[%s4 + $0x58] sm:$0xff] %v1672
    %1705 = vst [vmem:[%s4 + $0x60] sm:$0xff] %v1673
    %1706 = vst [vmem:[%s4 + $0x68] sm:$0xff] %v1674
    %1707 = vst [vmem:[%s4 + $0x70] sm:$0xff] %v1675
    %1708 = vst [vmem:[%s4 + $0x78] sm:$0xff] %v1676
    %1709 = vst [vmem:[%s4 + $0x80] sm:$0xff] %v1677
    %1710 = vst [vmem:[%s4 + $0x88] sm:$0xff] %v1678
    %1711 = vst [vmem:[%s4 + $0x90] sm:$0xff] %v1679
    %1712 = vst [vmem:[%s4 + $0x98] sm:$0xff] %v1680
    %1713 = vst [vmem:[%s4 + $0xa0] sm:$0xff] %v1681
    %1714 = vst [vmem:[%s4 + $0xa8] sm:$0xff] %v1682
    %1715 = vst [vmem:[%s4 + $0xb0] sm:$0xff] %v1683
    %1716 = vst [vmem:[%s4 + $0xb8] sm:$0xff] %v1684
    %1717 = vst [vmem:[%s4 + $0xc0] sm:$0xff] %v1685
    %1718 = vst [vmem:[%s4 + $0xc8] sm:$0xff] %v1686
    %1719 = vst [vmem:[%s4 + $0xd0] sm:$0xff] %v1687
    %1720 = vst [vmem:[%s4 + $0xd8] sm:$0xff] %v1688
    %1721 = vst [vmem:[%s4 + $0xe0] sm:$0xff] %v1689
    %1722 = vst [vmem:[%s4 + $0xe8] sm:$0xff] %v1690
    %1723 = vst [vmem:[%s4 + $0xf0] sm:$0xff] %v1691
    %1724 = vst [vmem:[%s4 + $0xf8] sm:$0xff] %v1692
    // Predicated region
    $region22: #{forward.1} parent=1 // pred_check
      _
    $region23: #{forward.1} parent=1 // pred_check_branch
      %1726 = sbr.rel (0) target = $region25
    $region24: #{forward.1} parent=1 // pred_region
      _
    $region25: #{forward.1} parent=1 // pred_fallthru
      _
    // Predicated region
    $region26: #{forward.1} parent=1 // pred_check
      _
    $region27: #{forward.1} parent=1 // pred_check_branch
      %1728 = sbr.rel (0) target = $region29
    $region28: #{forward.1} parent=1 // pred_region
      _
    $region29: #{forward.1} parent=1 // pred_fallthru
      _
    %1729 = vsyncpa [#allocation3], 1

</llo_original>
